<compile_context>
chip_gen: v7x
topology: tpu7x:2x2x1
jax: 0.10.0
libtpu: 0.0.40
codegen_flags: <defaults>
</compile_context>

<pallas_src>
import jax
import jax.numpy as jnp
from jax import lax
from jax.experimental import pallas as pl
from jax.experimental.pallas import tpu as pltpu


def _round_up(x, m):
    return (x + m - 1) // m * m


def _make_dense_block_kernel(N, H, W, cin0_pad, G_pad, C_pad, P_pad, eps):
    """Builds the fused DenseBlock kernel (static dims captured by closure)."""
    Wp = W + 2
    inv_n = 1.0 / float(N * H * W)          # valid (interior) pixels per channel
    # Tap offsets in the flattened padded layout, (dy, dx) row-major — must
    # match the (3,3,C_pad,G_pad) -> (9*G_pad, C_pad) weight reshape below.
    tap_offsets = [(dy - 1) * Wp + (dx - 1) for dy in range(3) for dx in range(3)]

    def kernel(x_hbm, mask_ref, gamma_ref, beta_ref, w_ref,
               o_ref, sum_ref, sumsq_ref, dma_sem):
        layer = pl.program_id(0)

        # ---- one-time init: DMA the input channels, zero future rows, seed
        # ---- the cached per-channel BN sums ------------------------------
        @pl.when(layer == 0)
        def _init():
            cp = pltpu.make_async_copy(x_hbm, o_ref.at[0:cin0_pad, :], dma_sem)
            cp.start()
            cp.wait()
            # Future / padded channel rows must be exactly zero.
            o_ref[pl.ds(cin0_pad, C_pad - cin0_pad), :] = jnp.zeros(
                (C_pad - cin0_pad, P_pad), jnp.float32)
            a0 = o_ref[...]
            sum_ref[...] = jnp.sum(a0, axis=1, keepdims=True)
            sumsq_ref[...] = jnp.sum(a0 * a0, axis=1, keepdims=True)

        mask = mask_ref[...]                        # (1, P_pad): 1 interior, 0 border/tail
        a = o_ref[...]                              # (C_pad, P_pad) f32

        # ---- BatchNorm (cached batch stats, biased variance) + ReLU -------
        mean = sum_ref[...] * inv_n                                  # (C_pad, 1)
        var = jnp.maximum(sumsq_ref[...] * inv_n - mean * mean, 0.0)
        bn_scale = gamma_ref[0] * lax.rsqrt(var + eps)               # (C_pad, 1)
        bn_shift = beta_ref[0] - mean * bn_scale
        # BN + ReLU in f32, re-zero the padding border, cast operand to bf16.
        z = (jnp.maximum(a * bn_scale + bn_shift, 0.0) * mask).astype(jnp.bfloat16)

        # ---- 3x3 conv: one matmul, then 9 XLU lane-rolls of the partials ---
        # partial[t*G_pad + g, p] = sum_c w[dy,dx,c,g] * z[c, p]
        partial = jnp.dot(w_ref[0], z,
                          preferred_element_type=jnp.float32)        # (9*G_pad, P_pad)
        out = None
        for t, off in enumerate(tap_offsets):
            part = partial[t * G_pad:(t + 1) * G_pad, :]             # (G_pad, P_pad)
            if off != 0:
                # want out[g, p] += partial_t[g, p + off]  ==  roll by -off
                part = pltpu.roll(part, shift=(-off) % P_pad, axis=1)
            out = part if out is None else out + part
        # Wrapped lanes / border / lane-tail columns all have mask == 0.
        out = out * mask

        # ---- dense connectivity: append the new (8-aligned) channel rows ---
        c_start = pl.multiple_of(cin0_pad + layer * G_pad, 8)
        o_ref[pl.ds(c_start, G_pad), :] = out
        # Update cached BN statistics for the newly appended rows only.
        sum_ref[pl.ds(c_start, G_pad), :] = jnp.sum(out, axis=1, keepdims=True)
        sumsq_ref[pl.ds(c_start, G_pad), :] = jnp.sum(out * out, axis=1, keepdims=True)

    return kernel


def dense_block_forward(x_nchw, params, eps=1e-5):
    """Fused DenseBlock forward.  x_nchw: (N, C_in, H, W) -> (N, C_out, H, W)."""
    N, cin0, H, W = x_nchw.shape
    L = len(params)
    G = params[0][2].shape[-1]
    Hp, Wp = H + 2, W + 2

    cin0_pad = _round_up(cin0, 8)
    G_pad = _round_up(G, 8)
    C_pad = cin0_pad + L * G_pad
    P_valid = N * Hp * Wp
    P_pad = _round_up(P_valid, 128)          # lane-dense last dim (648 -> 768)

    # Real (concatenated-order) channel index -> padded 8-aligned row index.
    def row_of(c):
        if c < cin0:
            return c
        j, g = divmod(c - cin0, G)
        return cin0_pad + j * G_pad + g

    # Channel-major, zero-padded, lane-flattened input: (cin0_pad, P_pad).
    x_cp = jnp.pad(jnp.transpose(x_nchw, (1, 0, 2, 3)).astype(jnp.float32),
                   ((0, 0), (0, 0), (1, 1), (1, 1))).reshape(cin0, P_valid)
    x_cp = jnp.pad(x_cp, ((0, cin0_pad - cin0), (0, P_pad - P_valid)))

    # Interior mask: 1 inside the image, 0 on the zero border and lane tail.
    mask = jnp.pad(jnp.ones((N, H, W), jnp.float32),
                   ((0, 0), (1, 1), (1, 1))).reshape(1, P_valid)
    mask = jnp.pad(mask, ((0, 0), (0, P_pad - P_valid)))

    # Per-layer parameters scattered into the padded, 8-aligned channel layout
    # (zero-padded weights / gamma=1 / beta=0 are exact no-ops).
    gammas, betas, ws = [], [], []
    for i, (gamma, beta, w) in enumerate(params):
        cin = cin0 + i * G
        rows = jnp.array([row_of(c) for c in range(cin)], jnp.int32)
        g_full = jnp.ones((C_pad,), jnp.float32).at[rows].set(gamma.astype(jnp.float32))
        b_full = jnp.zeros((C_pad,), jnp.float32).at[rows].set(beta.astype(jnp.float32))
        w_full = jnp.zeros((3, 3, C_pad, G_pad), jnp.float32)
        w_full = w_full.at[:, :, rows, :G].set(w.astype(jnp.float32))
        # (3,3,C_pad,G_pad) -> (dy,dx,g,c) -> (9*G_pad, C_pad): rows = (tap, g).
        w9 = jnp.transpose(w_full, (0, 1, 3, 2)).reshape(9 * G_pad, C_pad)
        gammas.append(g_full)
        betas.append(b_full)
        ws.append(w9)
    gamma_all = jnp.stack(gammas).reshape(L, C_pad, 1)
    beta_all = jnp.stack(betas).reshape(L, C_pad, 1)
    w_all = jnp.stack(ws).astype(jnp.bfloat16)                 # (L, 9*G_pad, C_pad)

    kernel = _make_dense_block_kernel(N, H, W, cin0_pad, G_pad, C_pad, P_pad, eps)

    # VMEM budget from the actual buffer sizes (resident activation + bf16
    # operand + conv partials + double-buffered weight blocks), clamped to the
    # chip's capacity (smaller cap on v7x, larger on v5e/v6e).
    est = (C_pad * P_pad * 4                 # resident activation (f32)
           + C_pad * P_pad * 2               # bf16 BN/ReLU operand z
           + 9 * G_pad * P_pad * 4           # conv partials (f32)
           + 2 * G_pad * P_pad * 4           # rolled tap + accumulator
           + 2 * 9 * G_pad * C_pad * 2       # double-buffered conv weights
           + 4 * P_pad * 4                   # mask + small per-layer params
           + 2 * C_pad * 128 * 4)            # BN stat scratches (padded tiles)
    try:
        vmem_cap = pltpu.get_tpu_info().vmem_capacity_bytes
    except Exception:
        vmem_cap = 128 * 1024 * 1024
    vmem_limit = int(min(max(2 * est, 32 * 1024 * 1024), 0.8 * vmem_cap))

    cost = pl.CostEstimate(
        flops=2 * L * (9 * G_pad) * C_pad * P_pad,
        transcendentals=L * C_pad,
        bytes_accessed=(x_cp.size * 4 + mask.size * 4 + gamma_all.size * 4
                        + beta_all.size * 4 + w_all.size * 2 + C_pad * P_pad * 4))

    out2d = pl.pallas_call(
        kernel,
        out_shape=jax.ShapeDtypeStruct((C_pad, P_pad), jnp.float32),
        grid_spec=pltpu.PrefetchScalarGridSpec(
            num_scalar_prefetch=0,
            grid=(L,),
            in_specs=[
                pl.BlockSpec(memory_space=pl.ANY),                        # x (HBM, DMA'd once)
                pl.BlockSpec((1, P_pad), lambda l: (0, 0)),               # interior mask
                pl.BlockSpec((1, C_pad, 1), lambda l: (l, 0, 0)),         # gamma (per layer)
                pl.BlockSpec((1, C_pad, 1), lambda l: (l, 0, 0)),         # beta  (per layer)
                pl.BlockSpec((1, 9 * G_pad, C_pad), lambda l: (l, 0, 0)),  # conv weights
            ],
            out_specs=pl.BlockSpec((C_pad, P_pad), lambda l: (0, 0)),     # resident activation
            scratch_shapes=[
                pltpu.VMEM((C_pad, 1), jnp.float32),     # cached per-channel sum
                pltpu.VMEM((C_pad, 1), jnp.float32),     # cached per-channel sum of squares
                pltpu.SemaphoreType.DMA(()),             # input DMA semaphore
            ],
        ),
        compiler_params=pltpu.CompilerParams(
            dimension_semantics=("arbitrary",),          # layers are sequentially dependent
            vmem_limit_bytes=vmem_limit,
        ),
        cost_estimate=cost,
    )(x_cp, mask, gamma_all, beta_all, w_all)

    # Strip channel / lane padding, crop the spatial border, back to NCHW.
    rows_all = jnp.array([row_of(c) for c in range(cin0 + L * G)], jnp.int32)
    out = out2d[rows_all, :P_valid].reshape(-1, N, Hp, Wp)[:, :, 1:H + 1, 1:W + 1]
    return jnp.transpose(out, (1, 0, 2, 3))


def init_dense_block_params(key, nb_layers, in_planes, growth_rate):
    """Deterministic parameter init matching the module's shapes."""
    params = []
    for i in range(nb_layers):
        cin = in_planes + i * growth_rate
        key, wk = jax.random.split(key)
        # He-style init for the 3x3 conv (bias=False).  BN affine: gamma=1, beta=0.
        std = jnp.sqrt(2.0 / (9.0 * growth_rate))
        w = jax.random.normal(wk, (3, 3, cin, growth_rate), jnp.float32) * std
        gamma = jnp.ones((cin,), jnp.float32)
        beta = jnp.zeros((cin,), jnp.float32)
        params.append((gamma, beta, w))
    return params


def _reference_dense_block(x_nchw, params, eps=1e-5):
    """Pure-JAX reference (lax conv, f32) for correctness checking."""
    x = jnp.transpose(x_nchw, (0, 2, 3, 1))
    for (gamma, beta, w) in params:
        mean = jnp.mean(x, axis=(0, 1, 2))
        var = jnp.mean(jnp.square(x - mean), axis=(0, 1, 2))
        y = jnp.maximum((x - mean) / jnp.sqrt(var + eps) * gamma + beta, 0.0)
        out = lax.conv_general_dilated(
            y, w, window_strides=(1, 1), padding="SAME",
            dimension_numbers=("NHWC", "HWIO", "NHWC"))
        x = jnp.concatenate([x, out], axis=-1)
    return jnp.transpose(x, (0, 3, 1, 2))


if __name__ == "__main__":
    # Small shapes consistent with the module: NCHW input, 3 dense layers.
    N, in_planes, H, W = 2, 4, 16, 16
    nb_layers, growth_rate = 3, 4

    key = jax.random.PRNGKey(0)
    key, xk = jax.random.split(key)
    x_nchw = jax.random.normal(xk, (N, in_planes, H, W), jnp.float32)
    params = init_dense_block_params(key, nb_layers, in_planes, growth_rate)

    out = jax.block_until_ready(dense_block_forward(x_nchw, params))

    expected_channels = in_planes + nb_layers * growth_rate
    assert out.shape == (N, expected_channels, H, W), out.shape

    ref = jax.block_until_ready(_reference_dense_block(x_nchw, params))
    # bf16 MXU operands (f32 accumulation) vs. the pure-f32 reference.
    max_err = float(jnp.max(jnp.abs(out - ref)))
    assert jnp.allclose(out, ref, atol=5e-2, rtol=5e-2), max_err

    print("KERNEL_OK")
</pallas_src>

<mosaic_0001>
module attributes {stable_mosaic.version = 11 : i64} {
  func.func @kernel(%arg0: i32, %arg1: memref<8x768xf32, #tpu.memory_space<any>>, %arg2: memref<1x768xf32, #tpu.memory_space<vmem>>, %arg3: memref<1x32x1xf32, #tpu.memory_space<vmem>>, %arg4: memref<1x32x1xf32, #tpu.memory_space<vmem>>, %arg5: memref<1x72x32xbf16, #tpu.memory_space<vmem>>, %arg6: memref<32x768xf32, #tpu.memory_space<vmem>>, %arg7: memref<32x1xf32, #tpu.memory_space<vmem>>, %arg8: memref<32x1xf32, #tpu.memory_space<vmem>>, %arg9: memref<!tpu.dma_semaphore, #tpu.memory_space<semaphore_mem>>) attributes {dimension_semantics = [#tpu.dimension_semantics<arbitrary>], iteration_bounds = array<i64: 3>, scalar_prefetch = 0 : i64, scratch_operands = 3 : i64, tpu.core_type = #tpu.core_type<tc>, window_params = [{}, {pipeline_mode = #tpu.pipeline_mode<synchronous>, transform_indices = @transform_1, window_bounds = array<i64: 1, 768>}, {transform_indices = @transform_2, window_bounds = array<i64: 1, 32, 1>}, {transform_indices = @transform_3, window_bounds = array<i64: 1, 32, 1>}, {transform_indices = @transform_4, window_bounds = array<i64: 1, 72, 32>}, {pipeline_mode = #tpu.pipeline_mode<synchronous>, transform_indices = @transform_5, window_bounds = array<i64: 32, 768>}]} {
    %c0_i32 = arith.constant 0 : i32
    %0 = arith.cmpi eq, %arg0, %c0_i32 : i32
    %1 = arith.extui %0 : i1 to i32
    %c0_i32_0 = arith.constant 0 : i32
    %2 = arith.cmpi ne, %1, %c0_i32_0 : i32
    scf.if %2 {
      %c0_i32_28 = arith.constant 0 : i32
      %c0_i32_29 = arith.constant 0 : i32
      %78 = tpu.memref_slice %arg6[%c0_i32_28, %c0_i32_29] : memref<32x768xf32, #tpu.memory_space<vmem>> -> memref<8x768xf32, #tpu.memory_space<vmem>>
      tpu.enqueue_dma source(%arg1 : memref<8x768xf32, #tpu.memory_space<any>>) target(%78 : memref<8x768xf32, #tpu.memory_space<vmem>>) target_semaphore(%arg9 : memref<!tpu.dma_semaphore, #tpu.memory_space<semaphore_mem>>)
      %c0_i32_30 = arith.constant 0 : i32
      %c0_i32_31 = arith.constant 0 : i32
      %79 = tpu.memref_slice %arg6[%c0_i32_30, %c0_i32_31] : memref<32x768xf32, #tpu.memory_space<vmem>> -> memref<8x768xf32, #tpu.memory_space<vmem>>
      tpu.wait_dma2 semaphore(%arg9 : memref<!tpu.dma_semaphore, #tpu.memory_space<semaphore_mem>>) src(%arg1 : memref<8x768xf32, #tpu.memory_space<any>>) dst(%79 : memref<8x768xf32, #tpu.memory_space<vmem>>)
      %cst_32 = arith.constant 0.000000e+00 : f32
      %80 = vector.broadcast %cst_32 : f32 to vector<24x768xf32>
      %c8 = arith.constant 8 : index
      %c0_33 = arith.constant 0 : index
      %81 = vector.load %arg6[%c8, %c0_33] : memref<32x768xf32, #tpu.memory_space<vmem>>, vector<24x768xf32>
      tpu.vector_store %arg6[%c8, %c0_33], %80 {strides = array<i32>} : memref<32x768xf32, #tpu.memory_space<vmem>>, vector<24x768xf32>,
      %c0_34 = arith.constant 0 : index
      %c0_35 = arith.constant 0 : index
      %82 = vector.load %arg6[%c0_34, %c0_35] : memref<32x768xf32, #tpu.memory_space<vmem>>, vector<32x768xf32>
      %cst_36 = arith.constant dense<0.000000e+00> : vector<32xf32>
      %83 = vector.multi_reduction <add>, %82, %cst_36 [1] : vector<32x768xf32> to vector<32xf32>
      %84 = vector.shape_cast %83 : vector<32xf32> to vector<32x1xf32>
      %c0_37 = arith.constant 0 : index
      %c0_38 = arith.constant 0 : index
      %85 = vector.load %arg7[%c0_37, %c0_38] : memref<32x1xf32, #tpu.memory_space<vmem>>, vector<32x1xf32>
      tpu.vector_store %arg7[%c0_37, %c0_38], %84 {strides = array<i32>} : memref<32x1xf32, #tpu.memory_space<vmem>>, vector<32x1xf32>,
      %86 = arith.mulf %82, %82 : vector<32x768xf32>
      %cst_39 = arith.constant dense<0.000000e+00> : vector<32xf32>
      %87 = vector.multi_reduction <add>, %86, %cst_39 [1] : vector<32x768xf32> to vector<32xf32>
      %88 = vector.shape_cast %87 : vector<32xf32> to vector<32x1xf32>
      %c0_40 = arith.constant 0 : index
      %c0_41 = arith.constant 0 : index
      %89 = vector.load %arg8[%c0_40, %c0_41] : memref<32x1xf32, #tpu.memory_space<vmem>>, vector<32x1xf32>
      tpu.vector_store %arg8[%c0_40, %c0_41], %88 {strides = array<i32>} : memref<32x1xf32, #tpu.memory_space<vmem>>, vector<32x1xf32>,
    } else {
    }
    %c0 = arith.constant 0 : index
    %c0_1 = arith.constant 0 : index
    %3 = vector.load %arg2[%c0, %c0_1] : memref<1x768xf32, #tpu.memory_space<vmem>>, vector<1x768xf32>
    %c0_2 = arith.constant 0 : index
    %c0_3 = arith.constant 0 : index
    %4 = vector.load %arg6[%c0_2, %c0_3] : memref<32x768xf32, #tpu.memory_space<vmem>>, vector<32x768xf32>
    %c0_4 = arith.constant 0 : index
    %c0_5 = arith.constant 0 : index
    %5 = vector.load %arg7[%c0_4, %c0_5] : memref<32x1xf32, #tpu.memory_space<vmem>>, vector<32x1xf32>
    %cst = arith.constant 0.001953125 : f32
    %6 = vector.broadcast %cst : f32 to vector<32x1xf32>
    %7 = arith.mulf %5, %6 : vector<32x1xf32>
    %c0_6 = arith.constant 0 : index
    %c0_7 = arith.constant 0 : index
    %8 = vector.load %arg8[%c0_6, %c0_7] : memref<32x1xf32, #tpu.memory_space<vmem>>, vector<32x1xf32>
    %cst_8 = arith.constant 0.001953125 : f32
    %9 = vector.broadcast %cst_8 : f32 to vector<32x1xf32>
    %10 = arith.mulf %8, %9 : vector<32x1xf32>
    %11 = arith.mulf %7, %7 : vector<32x1xf32>
    %12 = arith.subf %10, %11 : vector<32x1xf32>
    %cst_9 = arith.constant 0.000000e+00 : f32
    %13 = vector.broadcast %cst_9 : f32 to vector<32x1xf32>
    %14 = arith.maximumf %12, %13 : vector<32x1xf32>
    %c0_10 = arith.constant 0 : index
    %c0_11 = arith.constant 0 : index
    %c0_12 = arith.constant 0 : index
    %15 = vector.load %arg3[%c0_10, %c0_11, %c0_12] : memref<1x32x1xf32, #tpu.memory_space<vmem>>, vector<1x32x1xf32>
    %16 = vector.shape_cast %15 : vector<1x32x1xf32> to vector<32x1xf32>
    %cst_13 = arith.constant 9.99999974E-6 : f32
    %17 = vector.broadcast %cst_13 : f32 to vector<32x1xf32>
    %18 = arith.addf %14, %17 : vector<32x1xf32>
    %19 = math.rsqrt %18 : vector<32x1xf32>
    %20 = arith.mulf %16, %19 : vector<32x1xf32>
    %c0_14 = arith.constant 0 : index
    %c0_15 = arith.constant 0 : index
    %c0_16 = arith.constant 0 : index
    %21 = vector.load %arg4[%c0_14, %c0_15, %c0_16] : memref<1x32x1xf32, #tpu.memory_space<vmem>>, vector<1x32x1xf32>
    %22 = vector.shape_cast %21 : vector<1x32x1xf32> to vector<32x1xf32>
    %23 = arith.mulf %7, %20 : vector<32x1xf32>
    %24 = arith.subf %22, %23 : vector<32x1xf32>
    %25 = vector.broadcast %20 : vector<32x1xf32> to vector<32x768xf32>
    %26 = arith.mulf %4, %25 : vector<32x768xf32>
    %27 = vector.broadcast %24 : vector<32x1xf32> to vector<32x768xf32>
    %28 = arith.addf %26, %27 : vector<32x768xf32>
    %cst_17 = arith.constant 0.000000e+00 : f32
    %29 = vector.broadcast %cst_17 : f32 to vector<32x768xf32>
    %30 = arith.maximumf %28, %29 : vector<32x768xf32>
    %31 = vector.broadcast %3 : vector<1x768xf32> to vector<32x768xf32>
    %32 = arith.mulf %30, %31 : vector<32x768xf32>
    %33 = arith.truncf %32 : vector<32x768xf32> to vector<32x768xbf16>
    %c0_18 = arith.constant 0 : index
    %c0_19 = arith.constant 0 : index
    %c0_20 = arith.constant 0 : index
    %34 = vector.load %arg5[%c0_18, %c0_19, %c0_20] : memref<1x72x32xbf16, #tpu.memory_space<vmem>>, vector<1x72x32xbf16>
    %35 = vector.shape_cast %34 : vector<1x72x32xbf16> to vector<72x32xbf16>
    %cst_21 = arith.constant dense<0.000000e+00> : vector<72x768xf32>
    %36 = tpu.matmul %35, %33, %cst_21 {dimension_numbers = #tpu.dot_dimension_numbers<[1], [0], [0], [1], [0, 0, 1, 1], [], []>} : vector<72x32xbf16>, vector<32x768xbf16>, vector<72x768xf32> -> vector<72x768xf32>
    %37 = vector.extract_strided_slice %36 {offsets = [0, 0], sizes = [8, 768], strides = [1, 1]} : vector<72x768xf32> to vector<8x768xf32>
    %c19_i32 = arith.constant 19 : i32
    %38 = tpu.dynamic_rotate %37 by %c19_i32 dim 1 : vector<8x768xf32>, i32 -> vector<8x768xf32>
    %39 = vector.extract_strided_slice %36 {offsets = [8, 0], sizes = [8, 768], strides = [1, 1]} : vector<72x768xf32> to vector<8x768xf32>
    %c18_i32 = arith.constant 18 : i32
    %40 = tpu.dynamic_rotate %39 by %c18_i32 dim 1 : vector<8x768xf32>, i32 -> vector<8x768xf32>
    %41 = arith.addf %38, %40 : vector<8x768xf32>
    %42 = vector.extract_strided_slice %36 {offsets = [16, 0], sizes = [8, 768], strides = [1, 1]} : vector<72x768xf32> to vector<8x768xf32>
    %c17_i32 = arith.constant 17 : i32
    %43 = tpu.dynamic_rotate %42 by %c17_i32 dim 1 : vector<8x768xf32>, i32 -> vector<8x768xf32>
    %44 = arith.addf %41, %43 : vector<8x768xf32>
    %45 = vector.extract_strided_slice %36 {offsets = [24, 0], sizes = [8, 768], strides = [1, 1]} : vector<72x768xf32> to vector<8x768xf32>
    %c1_i32 = arith.constant 1 : i32
    %46 = tpu.dynamic_rotate %45 by %c1_i32 dim 1 : vector<8x768xf32>, i32 -> vector<8x768xf32>
    %47 = arith.addf %44, %46 : vector<8x768xf32>
    %48 = vector.extract_strided_slice %36 {offsets = [32, 0], sizes = [8, 768], strides = [1, 1]} : vector<72x768xf32> to vector<8x768xf32>
    %49 = arith.addf %47, %48 : vector<8x768xf32>
    %50 = vector.extract_strided_slice %36 {offsets = [40, 0], sizes = [8, 768], strides = [1, 1]} : vector<72x768xf32> to vector<8x768xf32>
    %c767_i32 = arith.constant 767 : i32
    %51 = tpu.dynamic_rotate %50 by %c767_i32 dim 1 : vector<8x768xf32>, i32 -> vector<8x768xf32>
    %52 = arith.addf %49, %51 : vector<8x768xf32>
    %53 = vector.extract_strided_slice %36 {offsets = [48, 0], sizes = [8, 768], strides = [1, 1]} : vector<72x768xf32> to vector<8x768xf32>
    %c751_i32 = arith.constant 751 : i32
    %54 = tpu.dynamic_rotate %53 by %c751_i32 dim 1 : vector<8x768xf32>, i32 -> vector<8x768xf32>
    %55 = arith.addf %52, %54 : vector<8x768xf32>
    %56 = vector.extract_strided_slice %36 {offsets = [56, 0], sizes = [8, 768], strides = [1, 1]} : vector<72x768xf32> to vector<8x768xf32>
    %c750_i32 = arith.constant 750 : i32
    %57 = tpu.dynamic_rotate %56 by %c750_i32 dim 1 : vector<8x768xf32>, i32 -> vector<8x768xf32>
    %58 = arith.addf %55, %57 : vector<8x768xf32>
    %59 = vector.extract_strided_slice %36 {offsets = [64, 0], sizes = [8, 768], strides = [1, 1]} : vector<72x768xf32> to vector<8x768xf32>
    %c749_i32 = arith.constant 749 : i32
    %60 = tpu.dynamic_rotate %59 by %c749_i32 dim 1 : vector<8x768xf32>, i32 -> vector<8x768xf32>
    %61 = arith.addf %58, %60 : vector<8x768xf32>
    %62 = vector.broadcast %3 : vector<1x768xf32> to vector<8x768xf32>
    %63 = arith.mulf %61, %62 : vector<8x768xf32>
    %c8_i32 = arith.constant 8 : i32
    %64 = arith.muli %arg0, %c8_i32 : i32
    %c8_i32_22 = arith.constant 8 : i32
    %65 = arith.addi %c8_i32_22, %64 : i32
    %66 = tpu.assume_multiple %65, 8 : i32
    %67 = arith.index_cast %66 : i32 to index
    %c0_23 = arith.constant 0 : index
    %68 = vector.load %arg6[%67, %c0_23] : memref<32x768xf32, #tpu.memory_space<vmem>>, vector<8x768xf32>
    tpu.vector_store %arg6[%67, %c0_23], %63 {strides = array<i32>} : memref<32x768xf32, #tpu.memory_space<vmem>>, vector<8x768xf32>,
    %cst_24 = arith.constant dense<0.000000e+00> : vector<8xf32>
    %69 = vector.multi_reduction <add>, %63, %cst_24 [1] : vector<8x768xf32> to vector<8xf32>
    %70 = vector.shape_cast %69 : vector<8xf32> to vector<8x1xf32>
    %71 = arith.index_cast %66 : i32 to index
    %c0_25 = arith.constant 0 : index
    %72 = vector.load %arg7[%71, %c0_25] : memref<32x1xf32, #tpu.memory_space<vmem>>, vector<8x1xf32>
    tpu.vector_store %arg7[%71, %c0_25], %70 {strides = array<i32>} : memref<32x1xf32, #tpu.memory_space<vmem>>, vector<8x1xf32>,
    %73 = arith.mulf %63, %63 : vector<8x768xf32>
    %cst_26 = arith.constant dense<0.000000e+00> : vector<8xf32>
    %74 = vector.multi_reduction <add>, %73, %cst_26 [1] : vector<8x768xf32> to vector<8xf32>
    %75 = vector.shape_cast %74 : vector<8xf32> to vector<8x1xf32>
    %76 = arith.index_cast %66 : i32 to index
    %c0_27 = arith.constant 0 : index
    %77 = vector.load %arg8[%76, %c0_27] : memref<32x1xf32, #tpu.memory_space<vmem>>, vector<8x1xf32>
    tpu.vector_store %arg8[%76, %c0_27], %75 {strides = array<i32>} : memref<32x1xf32, #tpu.memory_space<vmem>>, vector<8x1xf32>,
    return
  }
  func.func @transform_1(%arg0: i32) -> (i32, i32) {
    %c0_i32 = arith.constant 0 : i32
    %c0_i32_0 = arith.constant 0 : i32
    %c0_i32_1 = arith.constant 0 : i32
    return %c0_i32, %c0_i32_0 : i32, i32
  }
  func.func @transform_2(%arg0: i32) -> (i32, i32, i32) {
    %c0_i32 = arith.constant 0 : i32
    %c0_i32_0 = arith.constant 0 : i32
    %c0_i32_1 = arith.constant 0 : i32
    return %arg0, %c0_i32, %c0_i32_0 : i32, i32, i32
  }
  func.func @transform_3(%arg0: i32) -> (i32, i32, i32) {
    %c0_i32 = arith.constant 0 : i32
    %c0_i32_0 = arith.constant 0 : i32
    %c0_i32_1 = arith.constant 0 : i32
    return %arg0, %c0_i32, %c0_i32_0 : i32, i32, i32
  }
  func.func @transform_4(%arg0: i32) -> (i32, i32, i32) {
    %c0_i32 = arith.constant 0 : i32
    %c0_i32_0 = arith.constant 0 : i32
    %c0_i32_1 = arith.constant 0 : i32
    return %arg0, %c0_i32, %c0_i32_0 : i32, i32, i32
  }
  func.func @transform_5(%arg0: i32) -> (i32, i32) {
    %c0_i32 = arith.constant 0 : i32
    %c0_i32_0 = arith.constant 0 : i32
    %c0_i32_1 = arith.constant 0 : i32
    return %c0_i32, %c0_i32_0 : i32, i32
  }
}

</mosaic_0001>

<llo_original>
// kernel: tpu_custom_call.1
$region0: #{tpu_custom_call.1}
  #allocation0 [shape = 'u32[]', space=smem, size = 0x4, offset = 0x4, fixed_abs, tag = 'smem constant byte address 0x4 - core index']
  #allocation1 [shape = 'u32[144,128]{1,0:T(1,128)}', space=vmem, size = 0x12000, scoped, tag = 'internal scratch']
  #allocation2 [shape = 'f32[32,1]{1,0:T(8,128)}', space=vmem, size = 0x4000, scoped, tag = 'scratch operand']
  #allocation3 [shape = 'f32[32,1]{1,0:T(8,128)}', space=vmem, size = 0x4000, scoped, tag = 'scratch operand']
  #allocation4 [shape = 's32[1]{0}', space=sflag, size = 0x4, scoped, tag = 'scratch operand']
  #allocation7 [shape = 's32[]', space=sflag, size = 0x4, offset = 0, fixed_abs, tag = 'sflag constant byte address 0x0 - dummy sync flag']
  %s0 = inlined_call_operand.vmem [shape: f32[8,768], index: 0, kind: input, shape index: {}]
  %s1 = inlined_call_operand.vmem [shape: f32[1,768], index: 1, kind: input, shape index: {}]
  %s2 = inlined_call_operand.vmem [shape: f32[3,32,1], index: 2, kind: input, shape index: {}]
  %s3 = inlined_call_operand.vmem [shape: f32[3,32,1], index: 3, kind: input, shape index: {}]
  %s4 = inlined_call_operand.vmem [shape: bf16[3,72,32], index: 4, kind: input, shape index: {}]
  %s5 = inlined_call_operand.hbm [shape: f32[32,768], index: 5, kind: output, shape index: {}]
  %s6 = sld [smem:[#allocation0]]
  $region87: #{tpu_custom_call.1} parent=0
    _
  %s8 = ssub.s32 1, %s6
  %s9 = scalar_select 0, %s8, %s6
  $region1: #{tpu_custom_call.1} parent=0
    #allocation5 [shape = 'u8[98304]{0}', space=vmem, size = 0x18000, scoped, tag = 'output window, operand 0, single buffered']
    #allocation6 [shape = 's32[2]{0}', space=sflag, size = 0x8, scoped, tag = 'scoped memory for tpu_custom_call.1']
    %10 = vsyncpa [#allocation6], 0
    loop: start=0, step=1, limit=5
    $region2: #{tpu_custom_call.1} parent=1 // loop_pre_header
      _
    $region3: #{tpu_custom_call.1} parent=1 // loop_header
      %s12 = sphi 0, %s16
      %p13 = scmp.ge.s32.totalorder %s12, 5
      %s20 = sphi 0, %s20
      %s22 = sphi 0, %s20
      %s23 = sphi 0, %s22
      %s37 = sphi 0, %s23
      %s43 = sphi 0, %s45
      %s46 = sphi 0, %s43
      %s47 = sphi 0, %s46
      %s63 = sphi 0, %s47
      %s69 = sphi 0, %s71
      %s72 = sphi 0, %s69
      %s73 = sphi 0, %s72
      %s89 = sphi 0, %s73
      %s95 = sphi 0, %s97
      %s98 = sphi 0, %s95
      %s99 = sphi 0, %s98
      %s115 = sphi 0, %s99
      %s119 = sphi 0, %s119
      %s121 = sphi 0, %s119
      %s122 = sphi 0, %s121
      %s136 = sphi 0, %s122
    $region4: #{tpu_custom_call.1} parent=1 // loop_header_branch
      %15 = sbr.rel (%p13) target = $region8
    $region5: #{tpu_custom_call.1} parent=1 // loop_body
      %s17 = ssub.s32 %s12, 1
      %s18 = ssub.s32 %s12, 2
      %s19 = sadd.s32 %s12, 1
      %s21 = sadd.s32 %s20, 1
      %p24 = scmp.eq.s32.totalorder %s12, 2
      %p25 = scmp.ne.s32.totalorder %s20, %s22
      %p26 = scmp.eq.s32.totalorder %s12, 0
      %p27 = por %p25, %p26
      %p28 = scmp.ne.s32.totalorder %s20, %s22
      %p29 = scmp.eq.s32.totalorder %s17, 2
      %p30 = por %p28, %p29
      %p31 = scmp.ne.s32.totalorder %s22, %s23
      %p32 = scmp.eq.s32.totalorder %s17, 0
      %p33 = por %p31, %p32
      %p34 = scmp.ne.s32.totalorder %s22, %s23
      %p35 = scmp.eq.s32.totalorder %s18, 2
      %p36 = por %p34, %p35
      %p38 = scmp.ne.s32.totalorder %s23, %s37
      %p39 = scmp.eq.s32.totalorder %s18, 0
      %p40 = por %p38, %p39
      %s41 = ssub.s32 %s12, %s19
      %p42 = scmp.eq.s32.totalorder %s41, 0
      %s44 = sadd.s32 %s43, 1
      %s45 = scalar_select %p42, %s43, %s44
      %p48 = pneg %p42
      %p49 = scmp.eq.s32.totalorder %s12, 2
      %p50 = por %p48, %p49
      %p51 = scmp.ne.s32.totalorder %s43, %s46
      %p52 = scmp.eq.s32.totalorder %s12, 0
      %p53 = por %p51, %p52
      %p54 = scmp.ne.s32.totalorder %s43, %s46
      %p55 = scmp.eq.s32.totalorder %s17, 2
      %p56 = por %p54, %p55
      %p57 = scmp.ne.s32.totalorder %s46, %s47
      %p58 = scmp.eq.s32.totalorder %s17, 0
      %p59 = por %p57, %p58
      %p60 = scmp.ne.s32.totalorder %s46, %s47
      %p61 = scmp.eq.s32.totalorder %s18, 2
      %p62 = por %p60, %p61
      %p64 = scmp.ne.s32.totalorder %s47, %s63
      %p65 = scmp.eq.s32.totalorder %s18, 0
      %p66 = por %p64, %p65
      %s67 = ssub.s32 %s12, %s19
      %p68 = scmp.eq.s32.totalorder %s67, 0
      %s70 = sadd.s32 %s69, 1
      %s71 = scalar_select %p68, %s69, %s70
      %p74 = pneg %p68
      %p75 = scmp.eq.s32.totalorder %s12, 2
      %p76 = por %p74, %p75
      %p77 = scmp.ne.s32.totalorder %s69, %s72
      %p78 = scmp.eq.s32.totalorder %s12, 0
      %p79 = por %p77, %p78
      %p80 = scmp.ne.s32.totalorder %s69, %s72
      %p81 = scmp.eq.s32.totalorder %s17, 2
      %p82 = por %p80, %p81
      %p83 = scmp.ne.s32.totalorder %s72, %s73
      %p84 = scmp.eq.s32.totalorder %s17, 0
      %p85 = por %p83, %p84
      %p86 = scmp.ne.s32.totalorder %s72, %s73
      %p87 = scmp.eq.s32.totalorder %s18, 2
      %p88 = por %p86, %p87
      %p90 = scmp.ne.s32.totalorder %s73, %s89
      %p91 = scmp.eq.s32.totalorder %s18, 0
      %p92 = por %p90, %p91
      %s93 = ssub.s32 %s12, %s19
      %p94 = scmp.eq.s32.totalorder %s93, 0
      %s96 = sadd.s32 %s95, 1
      %s97 = scalar_select %p94, %s95, %s96
      %p100 = pneg %p94
      %p101 = scmp.eq.s32.totalorder %s12, 2
      %p102 = por %p100, %p101
      %p103 = scmp.ne.s32.totalorder %s95, %s98
      %p104 = scmp.eq.s32.totalorder %s12, 0
      %p105 = por %p103, %p104
      %p106 = scmp.ne.s32.totalorder %s95, %s98
      %p107 = scmp.eq.s32.totalorder %s17, 2
      %p108 = por %p106, %p107
      %p109 = scmp.ne.s32.totalorder %s98, %s99
      %p110 = scmp.eq.s32.totalorder %s17, 0
      %p111 = por %p109, %p110
      %p112 = scmp.ne.s32.totalorder %s98, %s99
      %p113 = scmp.eq.s32.totalorder %s18, 2
      %p114 = por %p112, %p113
      %p116 = scmp.ne.s32.totalorder %s99, %s115
      %p117 = scmp.eq.s32.totalorder %s18, 0
      %p118 = por %p116, %p117
      %s120 = sadd.s32 %s119, 1
      %p123 = scmp.eq.s32.totalorder %s12, 2
      %p124 = scmp.ne.s32.totalorder %s119, %s121
      %p125 = scmp.eq.s32.totalorder %s12, 0
      %p126 = por %p124, %p125
      %p127 = scmp.ne.s32.totalorder %s119, %s121
      %p128 = scmp.eq.s32.totalorder %s17, 2
      %p129 = por %p127, %p128
      %p130 = scmp.ne.s32.totalorder %s121, %s122
      %p131 = scmp.eq.s32.totalorder %s17, 0
      %p132 = por %p130, %p131
      %p133 = scmp.ne.s32.totalorder %s121, %s122
      %p134 = scmp.eq.s32.totalorder %s18, 2
      %p135 = por %p133, %p134
      %p137 = scmp.ne.s32.totalorder %s122, %s136
      %p138 = scmp.eq.s32.totalorder %s18, 0
      %p139 = por %p137, %p138
      %p140 = scmp.le.s32.totalorder 1, %s12
      %p141 = scmp.lt.s32.totalorder %s12, 4
      %p142 = pnand %p140, %p141
      %p143 = pneg %p142
      // Predicated region
      $region9: #{tpu_custom_call.1} parent=5 // pred_check
        _
      $region10: #{tpu_custom_call.1} parent=5 // pred_check_branch
        %145 = sbr.rel (%p142) target = $region12
      $region11: #{tpu_custom_call.1} parent=5 // pred_region
        %s146 = ssub.s32 %s12, 1
        // Predicated region
        $region13: #{tpu_custom_call.1} parent=11 // pred_check
          %p147 = pneg %p33
        $region14: #{tpu_custom_call.1} parent=11 // pred_check_branch
          %149 = sbr.rel (%p147) target = $region16
        $region15: #{tpu_custom_call.1} parent=11 // pred_region
          _
        $region16: #{tpu_custom_call.1} parent=11 // pred_fallthru
          _
      $region12: #{tpu_custom_call.1} parent=5 // pred_fallthru
        _
      %p150 = scmp.lt.s32.totalorder %s12, 3
      // Predicated region
      $region17: #{tpu_custom_call.1} parent=5 // pred_check
        %p151 = pneg %p150
      $region18: #{tpu_custom_call.1} parent=5 // pred_check_branch
        %153 = sbr.rel (%p151) target = $region20
      $region19: #{tpu_custom_call.1} parent=5 // pred_region
        // Predicated region
        $region21: #{tpu_custom_call.1} parent=19 // pred_check
          %p154 = pneg %p53
        $region22: #{tpu_custom_call.1} parent=19 // pred_check_branch
          %156 = sbr.rel (%p154) target = $region24
        $region23: #{tpu_custom_call.1} parent=19 // pred_region
          %p157 = scmp.lt.s32.totalorder %s12, 2
          %s158 = scalar_select %p157, %s12, 2
          %s159 = smul.addr %s158, 4
          %s160 = smul.addr %s159, 8
          %s161 = scalar_lea.vmem %s2, %s160
        $region24: #{tpu_custom_call.1} parent=19 // pred_fallthru
          _
        // Predicated region
        $region25: #{tpu_custom_call.1} parent=19 // pred_check
          %p162 = pneg %p79
        $region26: #{tpu_custom_call.1} parent=19 // pred_check_branch
          %164 = sbr.rel (%p162) target = $region28
        $region27: #{tpu_custom_call.1} parent=19 // pred_region
          %p165 = scmp.lt.s32.totalorder %s12, 2
          %s166 = scalar_select %p165, %s12, 2
          %s167 = smul.addr %s166, 4
          %s168 = smul.addr %s167, 8
          %s169 = scalar_lea.vmem %s3, %s168
        $region28: #{tpu_custom_call.1} parent=19 // pred_fallthru
          _
        // Predicated region
        $region29: #{tpu_custom_call.1} parent=19 // pred_check
          %p170 = pneg %p105
        $region30: #{tpu_custom_call.1} parent=19 // pred_check_branch
          %172 = sbr.rel (%p170) target = $region32
        $region31: #{tpu_custom_call.1} parent=19 // pred_region
          %p173 = scmp.lt.s32.totalorder %s12, 2
          %s174 = scalar_select %p173, %s12, 2
          %s175 = smul.addr %s174, 9
          %s176 = smul.addr %s175, 4
          %s177 = scalar_lea.vmem %s4, %s176
        $region32: #{tpu_custom_call.1} parent=19 // pred_fallthru
          _
      $region20: #{tpu_custom_call.1} parent=5 // pred_fallthru
        _
      %p178 = scmp.le.s32.totalorder 1, %s12
      %p179 = scmp.lt.s32.totalorder %s12, 4
      %p180 = pnand %p178, %p179
      %p181 = pneg %p180
      // Predicated region
      $region33: #{tpu_custom_call.1} parent=5 // pred_check
        _
      $region34: #{tpu_custom_call.1} parent=5 // pred_check_branch
        %183 = sbr.rel (%p180) target = $region36
      $region35: #{tpu_custom_call.1} parent=5 // pred_region
        %s184 = ssub.s32 %s12, 1
        %p185 = pneg %p33
        %p186 = pneg %p30
        %p187 = scmp.lt.s32.totalorder %s17, 2
        %s188 = scalar_select %p187, %s17, 2
        %s189 = smul.addr %s188, 4
        %s190 = smul.addr %s189, 8
        %s191 = scalar_lea.vmem %s2, %s190
        %p192 = pneg %p59
        %p193 = pneg %p56
        %p194 = scmp.lt.s32.totalorder %s17, 2
        %s195 = scalar_select %p194, %s17, 2
        %s196 = smul.addr %s195, 4
        %s197 = smul.addr %s196, 8
        %s198 = scalar_lea.vmem %s3, %s197
        %p199 = pneg %p85
        %p200 = pneg %p82
        %p201 = scmp.lt.s32.totalorder %s17, 2
        %s202 = scalar_select %p201, %s17, 2
        %s203 = smul.addr %s202, 9
        %s204 = smul.addr %s203, 4
        %s205 = scalar_lea.vmem %s4, %s204
        %p206 = pneg %p111
        %p207 = pneg %p108
        %p208 = pneg %p132
        %p209 = pneg %p129
        %p210 = scmp.lt.s32.totalorder %s17, 2
        %s211 = scalar_select %p210, %s17, 2
        %s212 = smul.addr %s211, 4
        %s213 = smul.addr %s212, 8
        %s214 = scalar_lea.vmem %s2, %s213
        %p215 = scmp.lt.s32.totalorder %s17, 2
        %s216 = scalar_select %p215, %s17, 2
        %s217 = smul.addr %s216, 4
        %s218 = smul.addr %s217, 8
        %s219 = scalar_lea.vmem %s3, %s218
        %p220 = scmp.lt.s32.totalorder %s17, 2
        %s221 = scalar_select %p220, %s17, 2
        %s222 = smul.addr %s221, 9
        %s223 = smul.addr %s222, 4
        %s224 = scalar_lea.vmem %s4, %s223
        %p226 = scmp.eq.s32.totalorder %s17, 0
        // Predicated region
        $region37: #{tpu_custom_call.1} parent=35 // pred_check
          %p227 = pneg %p226
        $region38: #{tpu_custom_call.1} parent=35 // pred_check_branch
          %229 = sbr.rel (%p227) target = $region40
        $region39: #{tpu_custom_call.1} parent=35 // pred_region
          %p231 = scmp.lt.u32.totalorder 48, 8
          %p232 = pneg %p231
          // Predicated region
          $region41: #{tpu_custom_call.1} parent=39 // pred_check
            _
          $region42: #{tpu_custom_call.1} parent=39 // pred_check_branch
            %234 = sbr.rel (%p231) target = $region44
          $region43: #{tpu_custom_call.1} parent=39 // pred_region
            %s249 = sand.u32 48, 7
            %p250 = scmp.eq.s32.totalorder %s249, 0
            // Predicated region
            $region56: #{tpu_custom_call.1} parent=43 // pred_check
              %p251 = pneg %p250
            $region57: #{tpu_custom_call.1} parent=43 // pred_check_branch
              %253 = sbr.rel (%p251) target = $region59
            $region58: #{tpu_custom_call.1} parent=43 // pred_region
              loop: start=0, step=1, limit=1
              $region60: #{tpu_custom_call.1} parent=58 // loop_pre_header
                _
              $region61: #{tpu_custom_call.1} parent=58 // loop_header
                %s255 = sphi 0, %s259
                %p256 = scmp.ge.s32.totalorder %s255, 1
                %s260 = sphi %s0, %s0
                %s261 = sphi [#allocation5], [#allocation5]
              $region62: #{tpu_custom_call.1} parent=58 // loop_header_branch
                %258 = sbr.rel (%p256) target = $region66
              $region63: #{tpu_custom_call.1} parent=58 // loop_body
                %v262 = vld [vmem:[%s260] sm:$0xff]
                %263 = vst [vmem:[%s261] sm:$0xff] %v262
                %v264 = vld [vmem:[%s260 + $0x8] sm:$0xff]
                %265 = vst [vmem:[%s261 + $0x8] sm:$0xff] %v264
                %v266 = vld [vmem:[%s260 + $0x10] sm:$0xff]
                %267 = vst [vmem:[%s261 + $0x10] sm:$0xff] %v266
                %v268 = vld [vmem:[%s260 + $0x18] sm:$0xff]
                %269 = vst [vmem:[%s261 + $0x18] sm:$0xff] %v268
                %v270 = vld [vmem:[%s260 + $0x20] sm:$0xff]
                %271 = vst [vmem:[%s261 + $0x20] sm:$0xff] %v270
                %v272 = vld [vmem:[%s260 + $0x28] sm:$0xff]
                %273 = vst [vmem:[%s261 + $0x28] sm:$0xff] %v272
              $region64: #{tpu_custom_call.1} parent=58 // loop_footer
                %s259 = sadd.s32 1, %s255
              $region65: #{tpu_custom_call.1} parent=58 // loop_footer_branch
                %254 = sbr.rel target = $region61
              $region66: #{tpu_custom_call.1} parent=58 // loop_exit
                _
            $region59: #{tpu_custom_call.1} parent=43 // pred_fallthru
              _
            %p274 = pneg %p250
            // Predicated region
            $region67: #{tpu_custom_call.1} parent=43 // pred_check
              _
            $region68: #{tpu_custom_call.1} parent=43 // pred_check_branch
              %276 = sbr.rel (%p250) target = $region70
            $region69: #{tpu_custom_call.1} parent=43 // pred_region
              %s277 = sand.u32 48, 7
            $region70: #{tpu_custom_call.1} parent=43 // pred_fallthru
              _
          $region44: #{tpu_custom_call.1} parent=39 // pred_fallthru
            _
          // Predicated region
          $region45: #{tpu_custom_call.1} parent=39 // pred_check
            %p235 = pneg %p231
          $region46: #{tpu_custom_call.1} parent=39 // pred_check_branch
            %237 = sbr.rel (%p235) target = $region48
          $region47: #{tpu_custom_call.1} parent=39 // pred_region
            %s238 = sshllo.u32 0, 48
            loop: start=0, step=1, limit=1
            $region49: #{tpu_custom_call.1} parent=47 // loop_pre_header
              _
            $region50: #{tpu_custom_call.1} parent=47 // loop_header
              %s240 = sphi 0, %s244
              %p241 = scmp.ge.s32.totalorder %s240, 1
              %s245 = sphi %s0, %s0
              %s246 = sphi [#allocation5], [#allocation5]
            $region51: #{tpu_custom_call.1} parent=47 // loop_header_branch
              %243 = sbr.rel (%p241) target = $region55
            $region52: #{tpu_custom_call.1} parent=47 // loop_body
              %v247 = vld [vmem:[%s245] sm:%s238]
              %248 = vst [vmem:[%s246] sm:%s238] %v247
            $region53: #{tpu_custom_call.1} parent=47 // loop_footer
              %s244 = sadd.s32 1, %s240
            $region54: #{tpu_custom_call.1} parent=47 // loop_footer_branch
              %239 = sbr.rel target = $region50
            $region55: #{tpu_custom_call.1} parent=47 // loop_exit
              _
          $region48: #{tpu_custom_call.1} parent=39 // pred_fallthru
            _
          // Predicated region
          $region71: #{tpu_custom_call.1} parent=39 // pred_check
            _
          $region72: #{tpu_custom_call.1} parent=39 // pred_check_branch
            %280 = sbr.rel (0) target = $region74
          $region73: #{tpu_custom_call.1} parent=39 // pred_region
            %281 = vsyncadd [#allocation4], 768
          $region74: #{tpu_custom_call.1} parent=39 // pred_fallthru
            _
          %s282 = smul.u32 8, 1
          %s283 = smul.u32 %s282, 6
          %s284 = sshll.u32 %s283, 4
          %285 = dma.done [#allocation4], %s284
          %286 = vst [vmem:[#allocation5 + $0x30] sm:$0xff] 0.0
          %287 = vst [vmem:[#allocation5 + $0x38] sm:$0xff] 0.0
          %288 = vst [vmem:[#allocation5 + $0x40] sm:$0xff] 0.0
          %289 = vst [vmem:[#allocation5 + $0x48] sm:$0xff] 0.0
          %290 = vst [vmem:[#allocation5 + $0x50] sm:$0xff] 0.0
          %291 = vst [vmem:[#allocation5 + $0x58] sm:$0xff] 0.0
          %292 = vst [vmem:[#allocation5 + $0x60] sm:$0xff] 0.0
          %293 = vst [vmem:[#allocation5 + $0x68] sm:$0xff] 0.0
          %294 = vst [vmem:[#allocation5 + $0x70] sm:$0xff] 0.0
          %295 = vst [vmem:[#allocation5 + $0x78] sm:$0xff] 0.0
          %296 = vst [vmem:[#allocation5 + $0x80] sm:$0xff] 0.0
          %297 = vst [vmem:[#allocation5 + $0x88] sm:$0xff] 0.0
          %298 = vst [vmem:[#allocation5 + $0x90] sm:$0xff] 0.0
          %299 = vst [vmem:[#allocation5 + $0x98] sm:$0xff] 0.0
          %300 = vst [vmem:[#allocation5 + $0xa0] sm:$0xff] 0.0
          %301 = vst [vmem:[#allocation5 + $0xa8] sm:$0xff] 0.0
          %302 = vst [vmem:[#allocation5 + $0xb0] sm:$0xff] 0.0
          %303 = vst [vmem:[#allocation5 + $0xb8] sm:$0xff] 0.0
          %v304 = vld [vmem:[#allocation5] sm:$0xff]
          %v305 = vld [vmem:[#allocation5 + $0x8] sm:$0xff]
          %v306 = vld [vmem:[#allocation5 + $0x10] sm:$0xff]
          %v307 = vld [vmem:[#allocation5 + $0x18] sm:$0xff]
          %v308 = vld [vmem:[#allocation5 + $0x20] sm:$0xff]
          %v309 = vld [vmem:[#allocation5 + $0x28] sm:$0xff]
          %v310 = vld [vmem:[#allocation5 + $0x30] sm:$0xff]
          %v311 = vld [vmem:[#allocation5 + $0x38] sm:$0xff]
          %v312 = vld [vmem:[#allocation5 + $0x40] sm:$0xff]
          %v313 = vld [vmem:[#allocation5 + $0x48] sm:$0xff]
          %v314 = vld [vmem:[#allocation5 + $0x50] sm:$0xff]
          %v315 = vld [vmem:[#allocation5 + $0x58] sm:$0xff]
          %v316 = vld [vmem:[#allocation5 + $0x60] sm:$0xff]
          %v317 = vld [vmem:[#allocation5 + $0x68] sm:$0xff]
          %v318 = vld [vmem:[#allocation5 + $0x70] sm:$0xff]
          %v319 = vld [vmem:[#allocation5 + $0x78] sm:$0xff]
          %v320 = vld [vmem:[#allocation5 + $0x80] sm:$0xff]
          %v321 = vld [vmem:[#allocation5 + $0x88] sm:$0xff]
          %v322 = vld [vmem:[#allocation5 + $0x90] sm:$0xff]
          %v323 = vld [vmem:[#allocation5 + $0x98] sm:$0xff]
          %v324 = vld [vmem:[#allocation5 + $0xa0] sm:$0xff]
          %v325 = vld [vmem:[#allocation5 + $0xa8] sm:$0xff]
          %v326 = vld [vmem:[#allocation5 + $0xb0] sm:$0xff]
          %v327 = vld [vmem:[#allocation5 + $0xb8] sm:$0xff]
          %v328 = vadd.f32 %v304, %v305
          %v329 = vadd.f32 %v328, %v306
          %v330 = vadd.f32 %v329, %v307
          %v331 = vadd.f32 %v330, %v308
          %v332 = vadd.f32 %v331, %v309
          %333 = vadd.xlane.f32.xlu0 %v332
          %v334 = vpop.xlane.xlu0 %333
          %v335 = vadd.f32 %v310, %v311
          %v336 = vadd.f32 %v335, %v312
          %v337 = vadd.f32 %v336, %v313
          %v338 = vadd.f32 %v337, %v314
          %v339 = vadd.f32 %v338, %v315
          %340 = vadd.xlane.f32.xlu0 %v339
          %v341 = vpop.xlane.xlu0 %340
          %v342 = vadd.f32 %v316, %v317
          %v343 = vadd.f32 %v342, %v318
          %v344 = vadd.f32 %v343, %v319
          %v345 = vadd.f32 %v344, %v320
          %v346 = vadd.f32 %v345, %v321
          %347 = vadd.xlane.f32.xlu0 %v346
          %v348 = vpop.xlane.xlu0 %347
          %v349 = vadd.f32 %v322, %v323
          %v350 = vadd.f32 %v349, %v324
          %v351 = vadd.f32 %v350, %v325
          %v352 = vadd.f32 %v351, %v326
          %v353 = vadd.f32 %v352, %v327
          %354 = vadd.xlane.f32.xlu0 %v353
          %v355 = vpop.xlane.xlu0 %354
          %vm356 = vcmask 7168
          %357 = vst.msk [vmem:[#allocation2] sm:$0xff] %vm356, %v334
          %358 = vst.msk [vmem:[#allocation2 + $0x8] sm:$0xff] %vm356, %v341
          %359 = vst.msk [vmem:[#allocation2 + $0x10] sm:$0xff] %vm356, %v348
          %360 = vst.msk [vmem:[#allocation2 + $0x18] sm:$0xff] %vm356, %v355
          %v361 = vmul.f32 %v304, %v304
          %v362 = vmul.f32 %v305, %v305
          %v363 = vmul.f32 %v306, %v306
          %v364 = vmul.f32 %v307, %v307
          %v365 = vmul.f32 %v308, %v308
          %v366 = vmul.f32 %v309, %v309
          %v367 = vmul.f32 %v310, %v310
          %v368 = vmul.f32 %v311, %v311
          %v369 = vmul.f32 %v312, %v312
          %v370 = vmul.f32 %v313, %v313
          %v371 = vmul.f32 %v314, %v314
          %v372 = vmul.f32 %v315, %v315
          %v373 = vmul.f32 %v316, %v316
          %v374 = vmul.f32 %v317, %v317
          %v375 = vmul.f32 %v318, %v318
          %v376 = vmul.f32 %v319, %v319
          %v377 = vmul.f32 %v320, %v320
          %v378 = vmul.f32 %v321, %v321
          %v379 = vmul.f32 %v322, %v322
          %v380 = vmul.f32 %v323, %v323
          %v381 = vmul.f32 %v324, %v324
          %v382 = vmul.f32 %v325, %v325
          %v383 = vmul.f32 %v326, %v326
          %v384 = vmul.f32 %v327, %v327
          %v385 = vadd.f32 %v361, %v362
          %v386 = vadd.f32 %v385, %v363
          %v387 = vadd.f32 %v386, %v364
          %v388 = vadd.f32 %v387, %v365
          %v389 = vadd.f32 %v388, %v366
          %390 = vadd.xlane.f32.xlu0 %v389
          %v391 = vpop.xlane.xlu0 %390
          %v392 = vadd.f32 %v367, %v368
          %v393 = vadd.f32 %v392, %v369
          %v394 = vadd.f32 %v393, %v370
          %v395 = vadd.f32 %v394, %v371
          %v396 = vadd.f32 %v395, %v372
          %397 = vadd.xlane.f32.xlu0 %v396
          %v398 = vpop.xlane.xlu0 %397
          %v399 = vadd.f32 %v373, %v374
          %v400 = vadd.f32 %v399, %v375
          %v401 = vadd.f32 %v400, %v376
          %v402 = vadd.f32 %v401, %v377
          %v403 = vadd.f32 %v402, %v378
          %404 = vadd.xlane.f32.xlu0 %v403
          %v405 = vpop.xlane.xlu0 %404
          %v406 = vadd.f32 %v379, %v380
          %v407 = vadd.f32 %v406, %v381
          %v408 = vadd.f32 %v407, %v382
          %v409 = vadd.f32 %v408, %v383
          %v410 = vadd.f32 %v409, %v384
          %411 = vadd.xlane.f32.xlu0 %v410
          %v412 = vpop.xlane.xlu0 %411
          %413 = vst.msk [vmem:[#allocation3] sm:$0xff] %vm356, %v391
          %414 = vst.msk [vmem:[#allocation3 + $0x8] sm:$0xff] %vm356, %v398
          %415 = vst.msk [vmem:[#allocation3 + $0x10] sm:$0xff] %vm356, %v405
          %416 = vst.msk [vmem:[#allocation3 + $0x18] sm:$0xff] %vm356, %v412
        $region40: #{tpu_custom_call.1} parent=35 // pred_fallthru
          _
        %v417 = vld [vmem:[%s1] sm:$0x3f]
        %v418 = vld [vmem:[#allocation5] sm:$0xff]
        %v419 = vld [vmem:[#allocation5 + $0x8] sm:$0xff]
        %v420 = vld [vmem:[#allocation5 + $0x10] sm:$0xff]
        %v421 = vld [vmem:[#allocation5 + $0x18] sm:$0xff]
        %v422 = vld [vmem:[#allocation5 + $0x20] sm:$0xff]
        %v423 = vld [vmem:[#allocation5 + $0x28] sm:$0xff]
        %v424 = vld [vmem:[#allocation5 + $0x30] sm:$0xff]
        %v425 = vld [vmem:[#allocation5 + $0x38] sm:$0xff]
        %v426 = vld [vmem:[#allocation5 + $0x40] sm:$0xff]
        %v427 = vld [vmem:[#allocation5 + $0x48] sm:$0xff]
        %v428 = vld [vmem:[#allocation5 + $0x50] sm:$0xff]
        %v429 = vld [vmem:[#allocation5 + $0x58] sm:$0xff]
        %v430 = vld [vmem:[#allocation5 + $0x60] sm:$0xff]
        %v431 = vld [vmem:[#allocation5 + $0x68] sm:$0xff]
        %v432 = vld [vmem:[#allocation5 + $0x70] sm:$0xff]
        %v433 = vld [vmem:[#allocation5 + $0x78] sm:$0xff]
        %v434 = vld [vmem:[#allocation5 + $0x80] sm:$0xff]
        %v435 = vld [vmem:[#allocation5 + $0x88] sm:$0xff]
        %v436 = vld [vmem:[#allocation5 + $0x90] sm:$0xff]
        %v437 = vld [vmem:[#allocation5 + $0x98] sm:$0xff]
        %v438 = vld [vmem:[#allocation5 + $0xa0] sm:$0xff]
        %v439 = vld [vmem:[#allocation5 + $0xa8] sm:$0xff]
        %v440 = vld [vmem:[#allocation5 + $0xb0] sm:$0xff]
        %v441 = vld [vmem:[#allocation5 + $0xb8] sm:$0xff]
        %v442 = vld [vmem:[#allocation2] sm:$0xff]
        %v443 = vld [vmem:[#allocation2 + $0x8] sm:$0xff]
        %v444 = vld [vmem:[#allocation2 + $0x10] sm:$0xff]
        %v445 = vld [vmem:[#allocation2 + $0x18] sm:$0xff]
        %v446 = vmul.f32 %v442, 0.001953125
        %v447 = vmul.f32 %v443, 0.001953125
        %v448 = vmul.f32 %v444, 0.001953125
        %v449 = vmul.f32 %v445, 0.001953125
        %v450 = vld [vmem:[#allocation3] sm:$0xff]
        %v451 = vld [vmem:[#allocation3 + $0x8] sm:$0xff]
        %v452 = vld [vmem:[#allocation3 + $0x10] sm:$0xff]
        %v453 = vld [vmem:[#allocation3 + $0x18] sm:$0xff]
        %v454 = vmul.f32 %v450, 0.001953125
        %v455 = vmul.f32 %v451, 0.001953125
        %v456 = vmul.f32 %v452, 0.001953125
        %v457 = vmul.f32 %v453, 0.001953125
        %v458 = vmul.f32 %v446, %v446
        %v459 = vmul.f32 %v447, %v447
        %v460 = vmul.f32 %v448, %v448
        %v461 = vmul.f32 %v449, %v449
        %v462 = vsub.f32 %v454, %v458
        %v463 = vsub.f32 %v455, %v459
        %v464 = vsub.f32 %v456, %v460
        %v465 = vsub.f32 %v457, %v461
        %v466 = vmax.f32 %v462, 0.0
        %v467 = vmax.f32 %v463, 0.0
        %v468 = vmax.f32 %v464, 0.0
        %v469 = vmax.f32 %v465, 0.0
        %v470 = vld [vmem:[%s214] sm:$0xff]
        %v471 = vld [vmem:[%s214 + $0x8] sm:$0xff]
        %v472 = vld [vmem:[%s214 + $0x10] sm:$0xff]
        %v473 = vld [vmem:[%s214 + $0x18] sm:$0xff]
        %v474 = vadd.f32 %v466, 1e-05
        %v475 = vadd.f32 %v467, 1e-05
        %v476 = vadd.f32 %v468, 1e-05
        %v477 = vadd.f32 %v469, 1e-05
        %v478 = vrsqrt.pop %v474
        %v479 = vrsqrt.pop %v475
        %v480 = vrsqrt.pop %v476
        %v481 = vrsqrt.pop %v477
        %v482 = vmul.f32 %v470, %v478
        %v483 = vmul.f32 %v471, %v479
        %v484 = vmul.f32 %v472, %v480
        %v485 = vmul.f32 %v473, %v481
        %v486 = vld [vmem:[%s219] sm:$0xff]
        %v487 = vld [vmem:[%s219 + $0x8] sm:$0xff]
        %v488 = vld [vmem:[%s219 + $0x10] sm:$0xff]
        %v489 = vld [vmem:[%s219 + $0x18] sm:$0xff]
        %v490 = vmul.f32 %v446, %v482
        %v491 = vmul.f32 %v447, %v483
        %v492 = vmul.f32 %v448, %v484
        %v493 = vmul.f32 %v449, %v485
        %v494 = vsub.f32 %v486, %v490
        %v495 = vsub.f32 %v487, %v491
        %v496 = vsub.f32 %v488, %v492
        %v497 = vsub.f32 %v489, %v493
        %499 = vset.pattern.permute.xlu0 0
        %500 = vperm.xlu0 %499, %v482
        %v501 = vpop.permute.xlu0 %500
        %504 = vset.pattern.permute.xlu0 0
        %505 = vperm.xlu0 %504, %v483
        %v506 = vpop.permute.xlu0 %505
        %509 = vset.pattern.permute.xlu0 0
        %510 = vperm.xlu0 %509, %v484
        %v511 = vpop.permute.xlu0 %510
        %514 = vset.pattern.permute.xlu0 0
        %515 = vperm.xlu0 %514, %v485
        %v516 = vpop.permute.xlu0 %515
        %v518 = vmul.f32 %v418, %v501
        %v519 = vmul.f32 %v419, %v501
        %v520 = vmul.f32 %v420, %v501
        %v521 = vmul.f32 %v421, %v501
        %v522 = vmul.f32 %v422, %v501
        %v523 = vmul.f32 %v423, %v501
        %v524 = vmul.f32 %v424, %v506
        %v525 = vmul.f32 %v425, %v506
        %v526 = vmul.f32 %v426, %v506
        %v527 = vmul.f32 %v427, %v506
        %v528 = vmul.f32 %v428, %v506
        %v529 = vmul.f32 %v429, %v506
        %v530 = vmul.f32 %v430, %v511
        %v531 = vmul.f32 %v431, %v511
        %v532 = vmul.f32 %v432, %v511
        %v533 = vmul.f32 %v433, %v511
        %v534 = vmul.f32 %v434, %v511
        %v535 = vmul.f32 %v435, %v511
        %v536 = vmul.f32 %v436, %v516
        %v537 = vmul.f32 %v437, %v516
        %v538 = vmul.f32 %v438, %v516
        %v539 = vmul.f32 %v439, %v516
        %v540 = vmul.f32 %v440, %v516
        %v541 = vmul.f32 %v441, %v516
        %543 = vset.pattern.permute.xlu0 0
        %544 = vperm.xlu0 %543, %v494
        %v545 = vpop.permute.xlu0 %544
        %548 = vset.pattern.permute.xlu0 0
        %549 = vperm.xlu0 %548, %v495
        %v550 = vpop.permute.xlu0 %549
        %553 = vset.pattern.permute.xlu0 0
        %554 = vperm.xlu0 %553, %v496
        %v555 = vpop.permute.xlu0 %554
        %558 = vset.pattern.permute.xlu0 0
        %559 = vperm.xlu0 %558, %v497
        %v560 = vpop.permute.xlu0 %559
        %v562 = vadd.f32 %v518, %v545
        %v563 = vadd.f32 %v519, %v545
        %v564 = vadd.f32 %v520, %v545
        %v565 = vadd.f32 %v521, %v545
        %v566 = vadd.f32 %v522, %v545
        %v567 = vadd.f32 %v523, %v545
        %v568 = vadd.f32 %v524, %v550
        %v569 = vadd.f32 %v525, %v550
        %v570 = vadd.f32 %v526, %v550
        %v571 = vadd.f32 %v527, %v550
        %v572 = vadd.f32 %v528, %v550
        %v573 = vadd.f32 %v529, %v550
        %v574 = vadd.f32 %v530, %v555
        %v575 = vadd.f32 %v531, %v555
        %v576 = vadd.f32 %v532, %v555
        %v577 = vadd.f32 %v533, %v555
        %v578 = vadd.f32 %v534, %v555
        %v579 = vadd.f32 %v535, %v555
        %v580 = vadd.f32 %v536, %v560
        %v581 = vadd.f32 %v537, %v560
        %v582 = vadd.f32 %v538, %v560
        %v583 = vadd.f32 %v539, %v560
        %v584 = vadd.f32 %v540, %v560
        %v585 = vadd.f32 %v541, %v560
        %v586 = vmax.f32 %v562, 0.0
        %v587 = vmax.f32 %v563, 0.0
        %v588 = vmax.f32 %v564, 0.0
        %v589 = vmax.f32 %v565, 0.0
        %v590 = vmax.f32 %v566, 0.0
        %v591 = vmax.f32 %v567, 0.0
        %v592 = vmax.f32 %v568, 0.0
        %v593 = vmax.f32 %v569, 0.0
        %v594 = vmax.f32 %v570, 0.0
        %v595 = vmax.f32 %v571, 0.0
        %v596 = vmax.f32 %v572, 0.0
        %v597 = vmax.f32 %v573, 0.0
        %v598 = vmax.f32 %v574, 0.0
        %v599 = vmax.f32 %v575, 0.0
        %v600 = vmax.f32 %v576, 0.0
        %v601 = vmax.f32 %v577, 0.0
        %v602 = vmax.f32 %v578, 0.0
        %v603 = vmax.f32 %v579, 0.0
        %v604 = vmax.f32 %v580, 0.0
        %v605 = vmax.f32 %v581, 0.0
        %v606 = vmax.f32 %v582, 0.0
        %v607 = vmax.f32 %v583, 0.0
        %v608 = vmax.f32 %v584, 0.0
        %v609 = vmax.f32 %v585, 0.0
        %v611 = vlaneseq
        %v612 = vshrl.u32 %v611, 7
        %v613 = vsub.s32 0, %v612
        %v614 = vrot.slane %v417, %v613
        %v615 = vlaneseq
        %v616 = vshrl.u32 %v615, 7
        %v617 = vsub.s32 1, %v616
        %v618 = vrot.slane %v417, %v617
        %v619 = vlaneseq
        %v620 = vshrl.u32 %v619, 7
        %v621 = vsub.s32 2, %v620
        %v622 = vrot.slane %v417, %v621
        %v623 = vlaneseq
        %v624 = vshrl.u32 %v623, 7
        %v625 = vsub.s32 3, %v624
        %v626 = vrot.slane %v417, %v625
        %v627 = vlaneseq
        %v628 = vshrl.u32 %v627, 7
        %v629 = vsub.s32 4, %v628
        %v630 = vrot.slane %v417, %v629
        %v631 = vlaneseq
        %v632 = vshrl.u32 %v631, 7
        %v633 = vsub.s32 5, %v632
        %v634 = vrot.slane %v417, %v633
        %v641 = vmul.f32 %v586, %v614
        %v642 = vmul.f32 %v587, %v618
        %v643 = vmul.f32 %v588, %v622
        %v644 = vmul.f32 %v589, %v626
        %v645 = vmul.f32 %v590, %v630
        %v646 = vmul.f32 %v591, %v634
        %v647 = vmul.f32 %v592, %v614
        %v648 = vmul.f32 %v593, %v618
        %v649 = vmul.f32 %v594, %v622
        %v650 = vmul.f32 %v595, %v626
        %v651 = vmul.f32 %v596, %v630
        %v652 = vmul.f32 %v597, %v634
        %v653 = vmul.f32 %v598, %v614
        %v654 = vmul.f32 %v599, %v618
        %v655 = vmul.f32 %v600, %v622
        %v656 = vmul.f32 %v601, %v626
        %v657 = vmul.f32 %v602, %v630
        %v658 = vmul.f32 %v603, %v634
        %v659 = vmul.f32 %v604, %v614
        %v660 = vmul.f32 %v605, %v618
        %v661 = vmul.f32 %v606, %v622
        %v662 = vmul.f32 %v607, %v626
        %v663 = vmul.f32 %v608, %v630
        %v664 = vmul.f32 %v609, %v634
        %v665 = vpack.c.bf16 %v647, %v641
        %v666 = vpack.c.bf16 %v648, %v642
        %v667 = vpack.c.bf16 %v649, %v643
        %v668 = vpack.c.bf16 %v650, %v644
        %v669 = vpack.c.bf16 %v651, %v645
        %v670 = vpack.c.bf16 %v652, %v646
        %v671 = vpack.c.bf16 %v659, %v653
        %v672 = vpack.c.bf16 %v660, %v654
        %v673 = vpack.c.bf16 %v661, %v655
        %v674 = vpack.c.bf16 %v662, %v656
        %v675 = vpack.c.bf16 %v663, %v657
        %v676 = vpack.c.bf16 %v664, %v658
        %v677 = vld [vmem:[%s224] sm:$0xf]
        %v678 = vld [vmem:[%s224 + $0x4] sm:$0xf]
        %v679 = vld [vmem:[%s224 + $0x8] sm:$0xf]
        %v680 = vld [vmem:[%s224 + $0xc] sm:$0xf]
        %v681 = vld [vmem:[%s224 + $0x10] sm:$0xf]
        %v682 = vld [vmem:[%s224 + $0x14] sm:$0xf]
        %v683 = vld [vmem:[%s224 + $0x18] sm:$0xf]
        %v684 = vld [vmem:[%s224 + $0x1c] sm:$0xf]
        %v685 = vld [vmem:[%s224 + $0x20] sm:$0xf]
        %v695 = vunpack.c.l.b16 %v677
        %v696 = vunpack.c.l.b16 %v678
        %v697 = vunpack.c.l.b16 %v679
        %v698 = vunpack.c.l.b16 %v680
        %v699 = vunpack.c.l.b16 %v681
        %v700 = vunpack.c.l.b16 %v682
        %v701 = vunpack.c.l.b16 %v683
        %v702 = vunpack.c.l.b16 %v684
        %v703 = vunpack.c.l.b16 %v685
        %v704 = vpack.c.b16 %v696, %v695
        %v705 = vpack.c.b16 %v698, %v697
        %v706 = vpack.c.b16 %v700, %v699
        %v707 = vpack.c.b16 %v702, %v701
        %v708 = vpack.c.b16 %v703, %v703
        %vm709 = vcmask 261120
        %v711 = vsel %vm709, %v704, 0
        %v714 = vsel %vm709, %v705, 0
        %v717 = vsel %vm709, %v706, 0
        %v720 = vsel %vm709, %v707, 0
        %v723 = vsel %vm709, %v708, 0
        %725 = vmatprep.subr.bf16.mxu0 %v666
        %726 = vmatpush1.bf16.msra.mxu0 %v665
        %727 = vmatprep.subr.bf16.mxu0 %v672
        %728 = vmatpush1.bf16.msra.mxu0 %v671
        %729 = vmatprep.subr.bf16.mxu0 0
        %730 = vmatpush1.bf16.msra.mxu0 0
        %731 = vmatprep.subr.bf16.mxu0 0
        %732 = vmatpush1.bf16.msra.mxu0 0
        %733 = vmatprep.subr.bf16.mxu0 0
        %734 = vmatpush1.bf16.msra.mxu0 0
        %735 = vmatprep.subr.bf16.mxu0 0
        %736 = vmatpush1.bf16.msra.mxu0 0
        %737 = vmatprep.subr.bf16.mxu0 0
        %738 = vmatpush1.bf16.msra.mxu0 0
        %739 = vmatprep.subr.bf16.mxu0 0
        %740 = vmatpush1.bf16.msra.mxu0 0
        %741 = vmatprep.subr.bf16.mxu0 0
        %742 = vmatpush1.bf16.msra.mxu0 0
        %743 = vmatprep.subr.bf16.mxu0 0
        %744 = vmatpush1.bf16.msra.mxu0 0
        %745 = vmatprep.subr.bf16.mxu0 0
        %746 = vmatpush1.bf16.msra.mxu0 0
        %747 = vmatprep.subr.bf16.mxu0 0
        %748 = vmatpush1.bf16.msra.mxu0 0
        %749 = vmatprep.subr.bf16.mxu0 0
        %750 = vmatpush1.bf16.msra.mxu0 0
        %751 = vmatprep.subr.bf16.mxu0 0
        %752 = vmatpush1.bf16.msra.mxu0 0
        %753 = vmatprep.subr.bf16.mxu0 0
        %754 = vmatpush1.bf16.msra.mxu0 0
        %755 = vmatprep.subr.bf16.mxu0 0
        %756 = vmatpush1.bf16.msra.mxu0 0
        %757 = vmatprep.mubr.bf16.mxu0 0
        %758 = vmatmul.mubr.bf16.gmra.mrb[0].mxu0 %v711
        %v759 = vpop.f32.mrb[0].mxu0
        %v760 = vadd.f32 0.0, %v759
        %v761 = vpop.f32.mrb[0].mxu0
        %v762 = vadd.f32 0.0, %v761
        %v763 = vpop.f32.mrb[0].mxu0
        %v764 = vadd.f32 0.0, %v763
        %v765 = vpop.f32.mrb[0].mxu0
        %v766 = vadd.f32 0.0, %v765
        %767 = vmatprep.mubr.bf16.mxu0 0
        %768 = vmatmul.mubr.bf16.gmra.mrb[0].mxu0 %v714
        %v769 = vpop.f32.mrb[0].mxu0
        %v770 = vadd.f32 0.0, %v769
        %v771 = vpop.f32.mrb[0].mxu0
        %v772 = vadd.f32 0.0, %v771
        %v773 = vpop.f32.mrb[0].mxu0
        %v774 = vadd.f32 0.0, %v773
        %v775 = vpop.f32.mrb[0].mxu0
        %v776 = vadd.f32 0.0, %v775
        %777 = vmatprep.mubr.bf16.mxu0 0
        %778 = vmatmul.mubr.bf16.gmra.mrb[0].mxu0 %v717
        %v779 = vpop.f32.mrb[0].mxu0
        %v780 = vadd.f32 0.0, %v779
        %v781 = vpop.f32.mrb[0].mxu0
        %v782 = vadd.f32 0.0, %v781
        %v783 = vpop.f32.mrb[0].mxu0
        %v784 = vadd.f32 0.0, %v783
        %v785 = vpop.f32.mrb[0].mxu0
        %v786 = vadd.f32 0.0, %v785
        %787 = vmatprep.mubr.bf16.mxu0 0
        %788 = vmatmul.mubr.bf16.gmra.mrb[0].mxu0 %v720
        %v789 = vpop.f32.mrb[0].mxu0
        %v790 = vadd.f32 0.0, %v789
        %v791 = vpop.f32.mrb[0].mxu0
        %v792 = vadd.f32 0.0, %v791
        %v793 = vpop.f32.mrb[0].mxu0
        %v794 = vadd.f32 0.0, %v793
        %v795 = vpop.f32.mrb[0].mxu0
        %v796 = vadd.f32 0.0, %v795
        %797 = vmatprep.mubr.bf16.mxu0 0
        %798 = vmatmul.mubr.bf16.gmra.mrb[0].mxu0 %v723
        %v799 = vpop.f32.mrb[0].mxu0
        %v800 = vadd.f32 0.0, %v799
        %v801 = vpop.f32.mrb[0].mxu0
        %v802 = vadd.f32 0.0, %v801
        %v803 = vpop.f32.mrb[0].mxu0
        %v804 = vpop.f32.mrb[0].mxu0
        %805 = vdwg.mxu0
        %806 = vmatprep.subr.bf16.mxu0 %v668
        %807 = vmatpush1.bf16.msra.mxu0 %v667
        %808 = vmatprep.subr.bf16.mxu0 %v674
        %809 = vmatpush1.bf16.msra.mxu0 %v673
        %810 = vmatprep.subr.bf16.mxu0 0
        %811 = vmatpush1.bf16.msra.mxu0 0
        %812 = vmatprep.subr.bf16.mxu0 0
        %813 = vmatpush1.bf16.msra.mxu0 0
        %814 = vmatprep.subr.bf16.mxu0 0
        %815 = vmatpush1.bf16.msra.mxu0 0
        %816 = vmatprep.subr.bf16.mxu0 0
        %817 = vmatpush1.bf16.msra.mxu0 0
        %818 = vmatprep.subr.bf16.mxu0 0
        %819 = vmatpush1.bf16.msra.mxu0 0
        %820 = vmatprep.subr.bf16.mxu0 0
        %821 = vmatpush1.bf16.msra.mxu0 0
        %822 = vmatprep.subr.bf16.mxu0 0
        %823 = vmatpush1.bf16.msra.mxu0 0
        %824 = vmatprep.subr.bf16.mxu0 0
        %825 = vmatpush1.bf16.msra.mxu0 0
        %826 = vmatprep.subr.bf16.mxu0 0
        %827 = vmatpush1.bf16.msra.mxu0 0
        %828 = vmatprep.subr.bf16.mxu0 0
        %829 = vmatpush1.bf16.msra.mxu0 0
        %830 = vmatprep.subr.bf16.mxu0 0
        %831 = vmatpush1.bf16.msra.mxu0 0
        %832 = vmatprep.subr.bf16.mxu0 0
        %833 = vmatpush1.bf16.msra.mxu0 0
        %834 = vmatprep.subr.bf16.mxu0 0
        %835 = vmatpush1.bf16.msra.mxu0 0
        %836 = vmatprep.subr.bf16.mxu0 0
        %837 = vmatpush1.bf16.msra.mxu0 0
        %838 = vmatprep.mubr.bf16.mxu0 0
        %839 = vmatmul.mubr.bf16.gmra.mrb[0].mxu0 %v711
        %v840 = vpop.f32.mrb[0].mxu0
        %v841 = vadd.f32 0.0, %v840
        %v842 = vpop.f32.mrb[0].mxu0
        %v843 = vadd.f32 0.0, %v842
        %v844 = vpop.f32.mrb[0].mxu0
        %v845 = vadd.f32 0.0, %v844
        %v846 = vpop.f32.mrb[0].mxu0
        %v847 = vadd.f32 0.0, %v846
        %848 = vmatprep.mubr.bf16.mxu0 0
        %849 = vmatmul.mubr.bf16.gmra.mrb[0].mxu0 %v714
        %v850 = vpop.f32.mrb[0].mxu0
        %v851 = vadd.f32 0.0, %v850
        %v852 = vpop.f32.mrb[0].mxu0
        %v853 = vadd.f32 0.0, %v852
        %v854 = vpop.f32.mrb[0].mxu0
        %v855 = vadd.f32 0.0, %v854
        %v856 = vpop.f32.mrb[0].mxu0
        %v857 = vadd.f32 0.0, %v856
        %858 = vmatprep.mubr.bf16.mxu0 0
        %859 = vmatmul.mubr.bf16.gmra.mrb[0].mxu0 %v717
        %v860 = vpop.f32.mrb[0].mxu0
        %v861 = vadd.f32 0.0, %v860
        %v862 = vpop.f32.mrb[0].mxu0
        %v863 = vadd.f32 0.0, %v862
        %v864 = vpop.f32.mrb[0].mxu0
        %v865 = vadd.f32 0.0, %v864
        %v866 = vpop.f32.mrb[0].mxu0
        %v867 = vadd.f32 0.0, %v866
        %868 = vmatprep.mubr.bf16.mxu0 0
        %869 = vmatmul.mubr.bf16.gmra.mrb[0].mxu0 %v720
        %v870 = vpop.f32.mrb[0].mxu0
        %v871 = vadd.f32 0.0, %v870
        %v872 = vpop.f32.mrb[0].mxu0
        %v873 = vadd.f32 0.0, %v872
        %v874 = vpop.f32.mrb[0].mxu0
        %v875 = vadd.f32 0.0, %v874
        %v876 = vpop.f32.mrb[0].mxu0
        %v877 = vadd.f32 0.0, %v876
        %878 = vmatprep.mubr.bf16.mxu0 0
        %879 = vmatmul.mubr.bf16.gmra.mrb[0].mxu0 %v723
        %v880 = vpop.f32.mrb[0].mxu0
        %v881 = vadd.f32 0.0, %v880
        %v882 = vpop.f32.mrb[0].mxu0
        %v883 = vadd.f32 0.0, %v882
        %v884 = vpop.f32.mrb[0].mxu0
        %v885 = vpop.f32.mrb[0].mxu0
        %886 = vdwg.mxu0
        %887 = vmatprep.subr.bf16.mxu0 %v670
        %888 = vmatpush1.bf16.msra.mxu0 %v669
        %889 = vmatprep.subr.bf16.mxu0 %v676
        %890 = vmatpush1.bf16.msra.mxu0 %v675
        %891 = vmatprep.subr.bf16.mxu0 0
        %892 = vmatpush1.bf16.msra.mxu0 0
        %893 = vmatprep.subr.bf16.mxu0 0
        %894 = vmatpush1.bf16.msra.mxu0 0
        %895 = vmatprep.subr.bf16.mxu0 0
        %896 = vmatpush1.bf16.msra.mxu0 0
        %897 = vmatprep.subr.bf16.mxu0 0
        %898 = vmatpush1.bf16.msra.mxu0 0
        %899 = vmatprep.subr.bf16.mxu0 0
        %900 = vmatpush1.bf16.msra.mxu0 0
        %901 = vmatprep.subr.bf16.mxu0 0
        %902 = vmatpush1.bf16.msra.mxu0 0
        %903 = vmatprep.subr.bf16.mxu0 0
        %904 = vmatpush1.bf16.msra.mxu0 0
        %905 = vmatprep.subr.bf16.mxu0 0
        %906 = vmatpush1.bf16.msra.mxu0 0
        %907 = vmatprep.subr.bf16.mxu0 0
        %908 = vmatpush1.bf16.msra.mxu0 0
        %909 = vmatprep.subr.bf16.mxu0 0
        %910 = vmatpush1.bf16.msra.mxu0 0
        %911 = vmatprep.subr.bf16.mxu0 0
        %912 = vmatpush1.bf16.msra.mxu0 0
        %913 = vmatprep.subr.bf16.mxu0 0
        %914 = vmatpush1.bf16.msra.mxu0 0
        %915 = vmatprep.subr.bf16.mxu0 0
        %916 = vmatpush1.bf16.msra.mxu0 0
        %917 = vmatprep.subr.bf16.mxu0 0
        %918 = vmatpush1.bf16.msra.mxu0 0
        %919 = vmatprep.mubr.bf16.mxu0 0
        %920 = vmatmul.mubr.bf16.gmra.mrb[0].mxu0 %v711
        %v921 = vpop.f32.mrb[0].mxu0
        %v922 = vadd.f32 0.0, %v921
        %v923 = vpop.f32.mrb[0].mxu0
        %v924 = vadd.f32 0.0, %v923
        %v925 = vpop.f32.mrb[0].mxu0
        %v926 = vadd.f32 0.0, %v925
        %v927 = vpop.f32.mrb[0].mxu0
        %v928 = vadd.f32 0.0, %v927
        %929 = vmatprep.mubr.bf16.mxu0 0
        %930 = vmatmul.mubr.bf16.gmra.mrb[0].mxu0 %v714
        %v931 = vpop.f32.mrb[0].mxu0
        %v932 = vadd.f32 0.0, %v931
        %v933 = vpop.f32.mrb[0].mxu0
        %v934 = vadd.f32 0.0, %v933
        %v935 = vpop.f32.mrb[0].mxu0
        %v936 = vadd.f32 0.0, %v935
        %v937 = vpop.f32.mrb[0].mxu0
        %v938 = vadd.f32 0.0, %v937
        %939 = vmatprep.mubr.bf16.mxu0 0
        %940 = vmatmul.mubr.bf16.gmra.mrb[0].mxu0 %v717
        %v941 = vpop.f32.mrb[0].mxu0
        %v942 = vadd.f32 0.0, %v941
        %v943 = vpop.f32.mrb[0].mxu0
        %v944 = vadd.f32 0.0, %v943
        %v945 = vpop.f32.mrb[0].mxu0
        %v946 = vadd.f32 0.0, %v945
        %v947 = vpop.f32.mrb[0].mxu0
        %v948 = vadd.f32 0.0, %v947
        %949 = vmatprep.mubr.bf16.mxu0 0
        %950 = vmatmul.mubr.bf16.gmra.mrb[0].mxu0 %v720
        %v951 = vpop.f32.mrb[0].mxu0
        %v952 = vadd.f32 0.0, %v951
        %v953 = vpop.f32.mrb[0].mxu0
        %v954 = vadd.f32 0.0, %v953
        %v955 = vpop.f32.mrb[0].mxu0
        %v956 = vadd.f32 0.0, %v955
        %v957 = vpop.f32.mrb[0].mxu0
        %v958 = vadd.f32 0.0, %v957
        %959 = vmatprep.mubr.bf16.mxu0 0
        %960 = vmatmul.mubr.bf16.gmra.mrb[0].mxu0 %v723
        %v961 = vpop.f32.mrb[0].mxu0
        %v962 = vadd.f32 0.0, %v961
        %v963 = vpop.f32.mrb[0].mxu0
        %v964 = vadd.f32 0.0, %v963
        %v965 = vpop.f32.mrb[0].mxu0
        %v966 = vpop.f32.mrb[0].mxu0
        %967 = vdwg.mxu0
        %968 = vrot.lane.b32.xlu0 %v760, 19
        %v969 = vpop.permute.xlu0 %968
        %970 = vrot.lane.b32.xlu0 %v762, 19
        %v971 = vpop.permute.xlu0 %970
        %972 = vrot.lane.b32.xlu0 %v841, 19
        %v973 = vpop.permute.xlu0 %972
        %974 = vrot.lane.b32.xlu0 %v843, 19
        %v975 = vpop.permute.xlu0 %974
        %976 = vrot.lane.b32.xlu0 %v922, 19
        %v977 = vpop.permute.xlu0 %976
        %978 = vrot.lane.b32.xlu0 %v924, 19
        %v979 = vpop.permute.xlu0 %978
        %v980 = vlaneseq
        %v981 = vand.u32 %v980, 127
        %vm982 = vcmp.lt.s32.totalorder %v981, 19
        %v983 = vsel %vm982, %v977, %v979
        %v984 = vsel %vm982, %v975, %v977
        %v985 = vsel %vm982, %v973, %v975
        %v986 = vsel %vm982, %v971, %v973
        %v987 = vsel %vm982, %v969, %v971
        %v988 = vsel %vm982, %v979, %v969
        %989 = vrot.lane.b32.xlu0 %v764, 18
        %v990 = vpop.permute.xlu0 %989
        %991 = vrot.lane.b32.xlu0 %v766, 18
        %v992 = vpop.permute.xlu0 %991
        %993 = vrot.lane.b32.xlu0 %v845, 18
        %v994 = vpop.permute.xlu0 %993
        %995 = vrot.lane.b32.xlu0 %v847, 18
        %v996 = vpop.permute.xlu0 %995
        %997 = vrot.lane.b32.xlu0 %v926, 18
        %v998 = vpop.permute.xlu0 %997
        %999 = vrot.lane.b32.xlu0 %v928, 18
        %v1000 = vpop.permute.xlu0 %999
        %vm1001 = vcmp.lt.s32.totalorder %v981, 18
        %v1002 = vsel %vm1001, %v998, %v1000
        %v1003 = vsel %vm1001, %v996, %v998
        %v1004 = vsel %vm1001, %v994, %v996
        %v1005 = vsel %vm1001, %v992, %v994
        %v1006 = vsel %vm1001, %v990, %v992
        %v1007 = vsel %vm1001, %v1000, %v990
        %v1008 = vadd.f32 %v988, %v1007
        %v1009 = vadd.f32 %v987, %v1006
        %v1010 = vadd.f32 %v986, %v1005
        %v1011 = vadd.f32 %v985, %v1004
        %v1012 = vadd.f32 %v984, %v1003
        %v1013 = vadd.f32 %v983, %v1002
        %1014 = vrot.lane.b32.xlu0 %v770, 17
        %v1015 = vpop.permute.xlu0 %1014
        %1016 = vrot.lane.b32.xlu0 %v772, 17
        %v1017 = vpop.permute.xlu0 %1016
        %1018 = vrot.lane.b32.xlu0 %v851, 17
        %v1019 = vpop.permute.xlu0 %1018
        %1020 = vrot.lane.b32.xlu0 %v853, 17
        %v1021 = vpop.permute.xlu0 %1020
        %1022 = vrot.lane.b32.xlu0 %v932, 17
        %v1023 = vpop.permute.xlu0 %1022
        %1024 = vrot.lane.b32.xlu0 %v934, 17
        %v1025 = vpop.permute.xlu0 %1024
        %vm1026 = vcmp.lt.s32.totalorder %v981, 17
        %v1027 = vsel %vm1026, %v1023, %v1025
        %v1028 = vsel %vm1026, %v1021, %v1023
        %v1029 = vsel %vm1026, %v1019, %v1021
        %v1030 = vsel %vm1026, %v1017, %v1019
        %v1031 = vsel %vm1026, %v1015, %v1017
        %v1032 = vsel %vm1026, %v1025, %v1015
        %v1033 = vadd.f32 %v1008, %v1032
        %v1034 = vadd.f32 %v1009, %v1031
        %v1035 = vadd.f32 %v1010, %v1030
        %v1036 = vadd.f32 %v1011, %v1029
        %v1037 = vadd.f32 %v1012, %v1028
        %v1038 = vadd.f32 %v1013, %v1027
        %1039 = vrot.lane.b32.xlu0 %v774, 1
        %v1040 = vpop.permute.xlu0 %1039
        %1041 = vrot.lane.b32.xlu0 %v776, 1
        %v1042 = vpop.permute.xlu0 %1041
        %1043 = vrot.lane.b32.xlu0 %v855, 1
        %v1044 = vpop.permute.xlu0 %1043
        %1045 = vrot.lane.b32.xlu0 %v857, 1
        %v1046 = vpop.permute.xlu0 %1045
        %1047 = vrot.lane.b32.xlu0 %v936, 1
        %v1048 = vpop.permute.xlu0 %1047
        %1049 = vrot.lane.b32.xlu0 %v938, 1
        %v1050 = vpop.permute.xlu0 %1049
        %vm1051 = vcmp.lt.s32.totalorder %v981, 1
        %v1052 = vsel %vm1051, %v1048, %v1050
        %v1053 = vsel %vm1051, %v1046, %v1048
        %v1054 = vsel %vm1051, %v1044, %v1046
        %v1055 = vsel %vm1051, %v1042, %v1044
        %v1056 = vsel %vm1051, %v1040, %v1042
        %v1057 = vsel %vm1051, %v1050, %v1040
        %v1058 = vadd.f32 %v1033, %v1057
        %v1059 = vadd.f32 %v1034, %v1056
        %v1060 = vadd.f32 %v1035, %v1055
        %v1061 = vadd.f32 %v1036, %v1054
        %v1062 = vadd.f32 %v1037, %v1053
        %v1063 = vadd.f32 %v1038, %v1052
        %v1064 = vadd.f32 %v1058, %v780
        %v1065 = vadd.f32 %v1059, %v782
        %v1066 = vadd.f32 %v1060, %v861
        %v1067 = vadd.f32 %v1061, %v863
        %v1068 = vadd.f32 %v1062, %v942
        %v1069 = vadd.f32 %v1063, %v944
        %1070 = vrot.lane.b32.xlu0 %v784, 127
        %v1071 = vpop.permute.xlu0 %1070
        %1072 = vrot.lane.b32.xlu0 %v786, 127
        %v1073 = vpop.permute.xlu0 %1072
        %1074 = vrot.lane.b32.xlu0 %v865, 127
        %v1075 = vpop.permute.xlu0 %1074
        %1076 = vrot.lane.b32.xlu0 %v867, 127
        %v1077 = vpop.permute.xlu0 %1076
        %1078 = vrot.lane.b32.xlu0 %v946, 127
        %v1079 = vpop.permute.xlu0 %1078
        %1080 = vrot.lane.b32.xlu0 %v948, 127
        %v1081 = vpop.permute.xlu0 %1080
        %vm1082 = vcmp.lt.s32.totalorder %v981, 127
        %v1083 = vsel %vm1082, %v1079, %v1081
        %v1084 = vsel %vm1082, %v1077, %v1079
        %v1085 = vsel %vm1082, %v1075, %v1077
        %v1086 = vsel %vm1082, %v1073, %v1075
        %v1087 = vsel %vm1082, %v1071, %v1073
        %v1088 = vsel %vm1082, %v1081, %v1071
        %v1089 = vadd.f32 %v1064, %v1087
        %v1090 = vadd.f32 %v1065, %v1086
        %v1091 = vadd.f32 %v1066, %v1085
        %v1092 = vadd.f32 %v1067, %v1084
        %v1093 = vadd.f32 %v1068, %v1083
        %v1094 = vadd.f32 %v1069, %v1088
        %1095 = vrot.lane.b32.xlu0 %v790, 111
        %v1096 = vpop.permute.xlu0 %1095
        %1097 = vrot.lane.b32.xlu0 %v792, 111
        %v1098 = vpop.permute.xlu0 %1097
        %1099 = vrot.lane.b32.xlu0 %v871, 111
        %v1100 = vpop.permute.xlu0 %1099
        %1101 = vrot.lane.b32.xlu0 %v873, 111
        %v1102 = vpop.permute.xlu0 %1101
        %1103 = vrot.lane.b32.xlu0 %v952, 111
        %v1104 = vpop.permute.xlu0 %1103
        %1105 = vrot.lane.b32.xlu0 %v954, 111
        %v1106 = vpop.permute.xlu0 %1105
        %vm1107 = vcmp.lt.s32.totalorder %v981, 111
        %v1108 = vsel %vm1107, %v1104, %v1106
        %v1109 = vsel %vm1107, %v1102, %v1104
        %v1110 = vsel %vm1107, %v1100, %v1102
        %v1111 = vsel %vm1107, %v1098, %v1100
        %v1112 = vsel %vm1107, %v1096, %v1098
        %v1113 = vsel %vm1107, %v1106, %v1096
        %v1114 = vadd.f32 %v1089, %v1112
        %v1115 = vadd.f32 %v1090, %v1111
        %v1116 = vadd.f32 %v1091, %v1110
        %v1117 = vadd.f32 %v1092, %v1109
        %v1118 = vadd.f32 %v1093, %v1108
        %v1119 = vadd.f32 %v1094, %v1113
        %1120 = vrot.lane.b32.xlu0 %v794, 110
        %v1121 = vpop.permute.xlu0 %1120
        %1122 = vrot.lane.b32.xlu0 %v796, 110
        %v1123 = vpop.permute.xlu0 %1122
        %1124 = vrot.lane.b32.xlu0 %v875, 110
        %v1125 = vpop.permute.xlu0 %1124
        %1126 = vrot.lane.b32.xlu0 %v877, 110
        %v1127 = vpop.permute.xlu0 %1126
        %1128 = vrot.lane.b32.xlu0 %v956, 110
        %v1129 = vpop.permute.xlu0 %1128
        %1130 = vrot.lane.b32.xlu0 %v958, 110
        %v1131 = vpop.permute.xlu0 %1130
        %vm1132 = vcmp.lt.s32.totalorder %v981, 110
        %v1133 = vsel %vm1132, %v1129, %v1131
        %v1134 = vsel %vm1132, %v1127, %v1129
        %v1135 = vsel %vm1132, %v1125, %v1127
        %v1136 = vsel %vm1132, %v1123, %v1125
        %v1137 = vsel %vm1132, %v1121, %v1123
        %v1138 = vsel %vm1132, %v1131, %v1121
        %v1139 = vadd.f32 %v1114, %v1137
        %v1140 = vadd.f32 %v1115, %v1136
        %v1141 = vadd.f32 %v1116, %v1135
        %v1142 = vadd.f32 %v1117, %v1134
        %v1143 = vadd.f32 %v1118, %v1133
        %v1144 = vadd.f32 %v1119, %v1138
        %1145 = vrot.lane.b32.xlu0 %v800, 109
        %v1146 = vpop.permute.xlu0 %1145
        %1147 = vrot.lane.b32.xlu0 %v802, 109
        %v1148 = vpop.permute.xlu0 %1147
        %1149 = vrot.lane.b32.xlu0 %v881, 109
        %v1150 = vpop.permute.xlu0 %1149
        %1151 = vrot.lane.b32.xlu0 %v883, 109
        %v1152 = vpop.permute.xlu0 %1151
        %1153 = vrot.lane.b32.xlu0 %v962, 109
        %v1154 = vpop.permute.xlu0 %1153
        %1155 = vrot.lane.b32.xlu0 %v964, 109
        %v1156 = vpop.permute.xlu0 %1155
        %vm1157 = vcmp.lt.s32.totalorder %v981, 109
        %v1158 = vsel %vm1157, %v1154, %v1156
        %v1159 = vsel %vm1157, %v1152, %v1154
        %v1160 = vsel %vm1157, %v1150, %v1152
        %v1161 = vsel %vm1157, %v1148, %v1150
        %v1162 = vsel %vm1157, %v1146, %v1148
        %v1163 = vsel %vm1157, %v1156, %v1146
        %v1164 = vadd.f32 %v1139, %v1162
        %v1165 = vadd.f32 %v1140, %v1161
        %v1166 = vadd.f32 %v1141, %v1160
        %v1167 = vadd.f32 %v1142, %v1159
        %v1168 = vadd.f32 %v1143, %v1158
        %v1169 = vadd.f32 %v1144, %v1163
        %v1170 = vmul.f32 %v1164, %v614
        %v1171 = vmul.f32 %v1165, %v618
        %v1172 = vmul.f32 %v1166, %v622
        %v1173 = vmul.f32 %v1167, %v626
        %v1174 = vmul.f32 %v1168, %v630
        %v1175 = vmul.f32 %v1169, %v634
        %s1176 = smul.u32 %s17, 8
        %s1177 = sadd.s32 %s1176, 8
        %s1178 = sshra.s32 %s1177, 3
        %s1179 = sand.u32 %s1177, 7
        %s1180 = smul.u32 %s1178, 6
        %s1181 = smul.addr %s1180, 8
        %s1182 = scalar_lea.vmem [#allocation5], %s1181
        %1183 = vst [vmem:[%s1182] sm:$0xff] %v1170
        %1184 = vst [vmem:[%s1182 + $0x8] sm:$0xff] %v1171
        %1185 = vst [vmem:[%s1182 + $0x10] sm:$0xff] %v1172
        %1186 = vst [vmem:[%s1182 + $0x18] sm:$0xff] %v1173
        %1187 = vst [vmem:[%s1182 + $0x20] sm:$0xff] %v1174
        %1188 = vst [vmem:[%s1182 + $0x28] sm:$0xff] %v1175
        %v1189 = vadd.f32 %v1170, %v1171
        %v1190 = vadd.f32 %v1189, %v1172
        %v1191 = vadd.f32 %v1190, %v1173
        %v1192 = vadd.f32 %v1191, %v1174
        %v1193 = vadd.f32 %v1192, %v1175
        %1194 = vadd.xlane.f32.xlu0 %v1193
        %v1195 = vpop.xlane.xlu0 %1194
        %s1196 = scalar_lea.vmem [#allocation2], %s1177
        %vm1197 = vcmask 7168
        %1198 = vst.msk [vmem:[%s1196] sm:$0xff] %vm1197, %v1195
        %v1199 = vmul.f32 %v1170, %v1170
        %v1200 = vmul.f32 %v1171, %v1171
        %v1201 = vmul.f32 %v1172, %v1172
        %v1202 = vmul.f32 %v1173, %v1173
        %v1203 = vmul.f32 %v1174, %v1174
        %v1204 = vmul.f32 %v1175, %v1175
        %v1205 = vadd.f32 %v1199, %v1200
        %v1206 = vadd.f32 %v1205, %v1201
        %v1207 = vadd.f32 %v1206, %v1202
        %v1208 = vadd.f32 %v1207, %v1203
        %v1209 = vadd.f32 %v1208, %v1204
        %1210 = vadd.xlane.f32.xlu0 %v1209
        %v1211 = vpop.xlane.xlu0 %1210
        %s1212 = scalar_lea.vmem [#allocation3], %s1177
        %1213 = vst.msk [vmem:[%s1212] sm:$0xff] %vm1197, %v1211
        // Predicated region
        $region75: #{tpu_custom_call.1} parent=35 // pred_check
          %p1214 = pneg %p129
        $region76: #{tpu_custom_call.1} parent=35 // pred_check_branch
          %1216 = sbr.rel (%p1214) target = $region78
        $region77: #{tpu_custom_call.1} parent=35 // pred_region
          %s1218 = ssub.s32 3072, 3072
          %1219 = vsyncadd [#allocation6], %s1218
          %s1220 = sshll.u32 [#allocation5], 4
          %s1221 = int_to_ptr.vmem [resolvable:$true] %s1220
          %1226 = dma.vmem_to_hbm [thread:$0]  %s1221, 3072, %s5, [#allocation6], 768, 768, 48
        $region78: #{tpu_custom_call.1} parent=35 // pred_fallthru
          _
        // Predicated region
        $region79: #{tpu_custom_call.1} parent=35 // pred_check
          %p1227 = pneg %p129
        $region80: #{tpu_custom_call.1} parent=35 // pred_check_branch
          %1229 = sbr.rel (%p1227) target = $region82
        $region81: #{tpu_custom_call.1} parent=35 // pred_region
          %1230 = dma.done [#allocation6], 3072
        $region82: #{tpu_custom_call.1} parent=35 // pred_fallthru
          _
      $region36: #{tpu_custom_call.1} parent=5 // pred_fallthru
        _
      %p1231 = scmp.le.s32.totalorder 2, %s12
      // Predicated region
      $region83: #{tpu_custom_call.1} parent=5 // pred_check
        %p1232 = pneg %p1231
      $region84: #{tpu_custom_call.1} parent=5 // pred_check_branch
        %1234 = sbr.rel (%p1232) target = $region86
      $region85: #{tpu_custom_call.1} parent=5 // pred_region
        %s1235 = ssub.s32 %s12, 2
      $region86: #{tpu_custom_call.1} parent=5 // pred_fallthru
        _
    $region6: #{tpu_custom_call.1} parent=1 // loop_footer
      %s16 = sadd.s32 1, %s12
    $region7: #{tpu_custom_call.1} parent=1 // loop_footer_branch
      %11 = sbr.rel target = $region3
    $region8: #{tpu_custom_call.1} parent=1 // loop_exit
      _
    %1236 = vsyncpa [#allocation6], 1
    %s1237 = scalar_lea.sflag [#allocation6], 1
    %1238 = vsyncpa %s1237, 1
  %1239 = vsyncmov [#allocation4]
  %s1240 = vpop.sfrf %1239
  %p1241 = scmp.eq.s32.totalorder %s1240, 0
  %p1242 = pneg %p1241
  %1244 = shalt.err (%p1242)

</llo_original>
